<compile_context>
chip_gen: v5e
topology: v5e:2x2
jax: 0.10.0
libtpu: 0.0.40
codegen_flags: <defaults>
</compile_context>

<pallas_src>
import numpy as np
import jax
import jax.numpy as jnp
from jax.experimental import pallas as pl
from jax.experimental.pallas import tpu as pltpu

FILTER_SIZES = (3, 4, 5)
NUM_FILTERS = 50                                # out_channels per conv
HIDDEN = NUM_FILTERS * len(FILTER_SIZES)        # 150 == hidden_size
KMAX = FILTER_SIZES[-1]                         # 5 sliding-window offsets
E_PAD = 128                                     # embed dim padded 100 -> 128
NEG = -1.0e30                                   # additive mask value


def _round_up(x, m):
    return ((x + m - 1) // m) * m


# --------------------------------------------------------------------------
# Generation-aware defaults
# --------------------------------------------------------------------------
def _tpu_defaults():
    kind = ""
    try:
        kind = jax.devices()[0].device_kind.lower()
    except Exception:
        pass
    if any(v in kind for v in ("v2", "v3", "v4", "v5")):
        # 128-deep MXU generations: keep K=128 native; 128 MiB physical VMEM.
        return dict(pair_k=False, vmem_limit_bytes=96 * 2**20,
                    tile_budget=36 * 2**20, prefer_even_tiles=False)
    if "v6" in kind:
        # 256-deep MXU, 128 MiB VMEM, single TensorCore.
        return dict(pair_k=True, vmem_limit_bytes=96 * 2**20,
                    tile_budget=36 * 2**20, prefer_even_tiles=False)
    # v7x / unknown: 256-deep MXU, 64 MiB VMEM, 2 TensorCores.
    return dict(pair_k=True, vmem_limit_bytes=44 * 2**20,
                tile_budget=14 * 2**20, prefer_even_tiles=True)


# --------------------------------------------------------------------------
# Kernel
# --------------------------------------------------------------------------
def _textcnn_kernel(embed_ref, wcat_ref, bcat_ref, mask_ref, wc_ref,
                    logits_ref, hidden_ref):
    """Fused conv(3/4/5 x E) -> static mask -> max-pool -> bias+ReLU -> Linear."""
    tb, lp_blk, ep = embed_ref.shape             # (TB, Lblk, E_PAD) bf16
    nk, kw, _ = wcat_ref.shape                   # (NK, 128|256, 150)
    lpw = mask_ref.shape[1]                      # working (masked) time extent
    pair = (kw == 2 * ep)                        # K=256 offset pairing?
    step = 2 if pair else 1

    emb_full = embed_ref[...]                    # (TB, Lblk, E_PAD) bf16
    emb = emb_full if lpw == lp_blk else emb_full[:, :lpw, :]   # aligned slice
    if pair:
        # Second lane-half of the K=256 LHS = window offset +1.  The block
        # carries one extra zero sublane tile so row `lpw` exists; this is the
        # single relayout copy left in the kernel -- every other offset is
        # realigned by rolling the f32 partial sums on the XLU.
        emb1 = emb_full[:, 1:lpw + 1, :]
        lhs = jnp.concatenate([emb, emb1], axis=-1)      # (TB, lpw, 256)
    else:
        lhs = emb                                        # (TB, lpw, 128)

    # One K=kw matmul per (paired) window offset over the full aligned time
    # extent; offsets realigned by static sublane rolls of the f32 partials.
    acc = jax.lax.dot_general(
        lhs, wcat_ref[0],
        dimension_numbers=(((2,), (0,)), ((), ())),
        preferred_element_type=jnp.float32)              # (TB, lpw, 150) f32
    for j in range(1, nk):
        part = jax.lax.dot_general(
            lhs, wcat_ref[j],
            dimension_numbers=(((2,), (0,)), ((), ())),
            preferred_element_type=jnp.float32)
        acc = acc + pltpu.roll(part, lpw - step * j, 1)

    # Static additive validity mask (0 valid / -1e30 invalid): one VPU add.
    acc = acc + mask_ref[...]                            # (1, lpw, 150) bcast

    pooled = jnp.max(acc, axis=1)                        # (TB, 150) f32
    # Bias + ReLU after the pool (equivalent: bias is time-invariant, max and
    # ReLU are monotone) -> O(TB*150) instead of O(TB*lpw*150) VPU work.
    hidden = jnp.maximum(pooled + bcat_ref[...], 0.0)
    hidden_ref[...] = hidden

    # Classifier: Linear(150, num_class, bias=False); output lane-padded to a
    # multiple of 128 so the store is an unmasked vst.
    logits_ref[...] = jax.lax.dot_general(
        hidden.astype(wc_ref.dtype), wc_ref[...],
        dimension_numbers=(((1,), (0,)), ((), ())),
        preferred_element_type=jnp.float32)


# --------------------------------------------------------------------------
# Wrapper
# --------------------------------------------------------------------------
def _build_time_mask(seq_len, lpw):
    """(1, lpw, 150) f32 additive mask: 0 where the conv window starting at t
    is valid for that channel group, -1e30 otherwise (trace-time constant)."""
    t = np.arange(lpw)[:, None]
    g = np.arange(HIDDEN)[None, :] // NUM_FILTERS        # 0,1,2 -> fs 3,4,5
    valid = t < (seq_len - 2 - g)                        # L - fs + 1 positions
    return np.where(valid, 0.0, NEG).astype(np.float32)[None]


def _pick_batch_tile(batch, lp_blk, lpw, ep, pair_k, budget_bytes,
                     prefer_even_tiles):
    """Largest multiple-of-8 batch tile whose real per-step VMEM footprint
    (double-buffered bf16 embed tile + f32 accumulator/partials + paired LHS)
    fits the generation budget; on 2-TC parts prefer an even grid."""
    per_row = 2 * lp_blk * ep * 2                # double-buffered bf16 embed
    per_row += 3 * lpw * HIDDEN * 4              # f32 acc + partial + rolled
    if pair_k:
        per_row += 3 * lpw * ep * 2              # shifted copy + 256-wide LHS
    fixed = 512 * 1024                           # weights, mask, outputs
    tb = (int(budget_bytes) - fixed) // max(per_row, 1)
    tb = max(8, min((tb // 8) * 8, 1024))
    b_ceil = _round_up(max(batch, 1), 8)
    tb = min(tb, b_ceil)
    if prefer_even_tiles and b_ceil >= 16:
        n = -(-b_ceil // tb)
        if n % 2 == 1:
            n += 1
            tb = max(8, _round_up(-(-b_ceil // n), 8))
    return tb


def textcnn_pallas(embed, wcat, bcat, wc, *, batch_tile=None):
    """embed: (B, L, E_PAD) bf16; wcat: (5,128,150) or (3,256,150) bf16;
    bcat: (1, 150) f32; wc: (150, C_pad) bf16 (C_pad multiple of 128)."""
    B, L, ep = embed.shape
    assert ep == E_PAD
    assert L >= KMAX, "sequence length must be >= the largest filter size (5)"
    defaults = _tpu_defaults()
    pair_k = (wcat.shape[1] == 2 * E_PAD)
    c_pad = wc.shape[1]

    # Time axis: multiple of 8, plus one extra zero sublane tile when pairing
    # so the +1-shifted lane-half of the LHS stays in bounds.
    lpw = _round_up(L, 8)
    lp_blk = lpw + (8 if pair_k else 0)
    embed = jnp.pad(embed, ((0, 0), (0, lp_blk - L), (0, 0)))
    mask = jnp.asarray(_build_time_mask(L, lpw))            # (1, lpw, 150) f32

    if batch_tile is None:
        tb = _pick_batch_tile(B, lp_blk, lpw, ep, pair_k,
                              defaults["tile_budget"],
                              defaults["prefer_even_tiles"])
    else:
        tb = batch_tile
    tb = max(8, (tb // 8) * 8)                   # sublane-aligned batch tile
    num_tiles = -(-B // tb)
    b_pad = num_tiles * tb
    if b_pad != B:
        embed = jnp.pad(embed, ((0, b_pad - B), (0, 0), (0, 0)))

    logits, hidden = pl.pallas_call(
        _textcnn_kernel,
        out_shape=(jax.ShapeDtypeStruct((b_pad, c_pad), jnp.float32),
                   jax.ShapeDtypeStruct((b_pad, HIDDEN), jnp.float32)),
        grid=(num_tiles,),
        in_specs=[
            pl.BlockSpec((tb, lp_blk, ep), lambda i: (i, 0, 0)),    # embed
            pl.BlockSpec(wcat.shape, lambda i: (0, 0, 0)),          # Wcat
            pl.BlockSpec((1, HIDDEN), lambda i: (0, 0)),            # bias
            pl.BlockSpec((1, lpw, HIDDEN), lambda i: (0, 0, 0)),    # mask
            pl.BlockSpec((HIDDEN, c_pad), lambda i: (0, 0)),        # classifier
        ],
        out_specs=(pl.BlockSpec((tb, c_pad), lambda i: (i, 0)),
                   pl.BlockSpec((tb, HIDDEN), lambda i: (i, 0))),
        compiler_params=pltpu.CompilerParams(
            dimension_semantics=("parallel",),
            vmem_limit_bytes=defaults["vmem_limit_bytes"]),
    )(embed, wcat, bcat, mask, wc)
    return logits[:B], hidden[:B]


# --------------------------------------------------------------------------
# Parameters (torch-equivalent layouts) and kernel-layout preparation
# --------------------------------------------------------------------------
def init_params(key, vocab_size, embedding_size, num_class):
    ks = jax.random.split(key, 9)
    emb = 0.1 * jax.random.normal(ks[0], (vocab_size, embedding_size),
                                  jnp.float32)
    emb = emb.at[0].set(0.0)                     # padding_idx=0
    params = {"embedding": emb}
    for i, fs in enumerate(FILTER_SIZES):
        fan_in = fs * embedding_size
        scale = 1.0 / jnp.sqrt(fan_in)
        params[f"w{fs}"] = scale * jax.random.normal(
            ks[1 + 2 * i], (fs, embedding_size, NUM_FILTERS), jnp.float32)
        params[f"b{fs}"] = scale * jax.random.normal(
            ks[2 + 2 * i], (NUM_FILTERS,), jnp.float32)
    wc = (1.0 / jnp.sqrt(HIDDEN)) * jax.random.normal(
        ks[7], (num_class, HIDDEN), jnp.float32)   # torch layout (out, in)
    params["wc_t"] = wc.T                           # (150, num_class)
    return params


def prepare_kernel_params(params, *, pair_k=None):
    """Pad/cast/fuse the torch-layout params into kernel layouts.  Call ONCE
    and reuse (hoisted out of the per-forward path)."""
    if pair_k is None:
        pair_k = _tpu_defaults()["pair_k"]
    E = params["embedding"].shape[1]
    assert E <= E_PAD
    emb_table = jnp.pad(params["embedding"], ((0, 0), (0, E_PAD - E)))

    nk_pad = 6 if pair_k else KMAX               # pad 5 -> 6 offsets for pairs
    wcat = jnp.zeros((nk_pad, E_PAD, HIDDEN), jnp.float32)
    for gi, fs in enumerate(FILTER_SIZES):
        wcat = wcat.at[:fs, :E,
                       gi * NUM_FILTERS:(gi + 1) * NUM_FILTERS].set(
            params[f"w{fs}"])
    if pair_k:                                   # (6,128,150) -> (3,256,150)
        wcat = wcat.reshape(3, 2 * E_PAD, HIDDEN)

    bcat = jnp.concatenate([params[f"b{fs}"] for fs in FILTER_SIZES])[None, :]

    num_class = params["wc_t"].shape[1]
    c_pad = _round_up(max(num_class, 1), 128)    # lane-dense logits
    wc = jnp.pad(params["wc_t"], ((0, 0), (0, c_pad - num_class)))

    return {
        "emb_table": emb_table.astype(jnp.bfloat16),   # (V, 128) bf16
        "wcat": wcat.astype(jnp.bfloat16),             # (5,128,150)|(3,256,150)
        "bcat": bcat.astype(jnp.float32),              # (1, 150) f32
        "wc": wc.astype(jnp.bfloat16),                 # (150, C_pad) bf16
        "num_class": num_class,
    }


def modelcnn_forward(params, x_ids, target, index, original_target, flag=1,
                     purity=None, kernel_params=None, batch_tile=None):
    """Forward pass of Modelcnn (flag != 0 path)."""
    if flag == 0:
        # TODO(synk): GBNR.apply (granular-ball clustering on CPU) has no
        # Pallas equivalent; the flag == 0 path is not implemented.
        raise NotImplementedError("flag == 0 (GBNR) path is not supported")
    kp = kernel_params if kernel_params is not None else \
        prepare_kernel_params(params)
    # TODO(synk): embedding gather kept as XLA glue (one HBM round-trip).
    embed = jnp.take(kp["emb_table"], x_ids, axis=0)   # (B, L, 128) bf16
    logits, hidden = textcnn_pallas(embed, kp["wcat"], kp["bcat"], kp["wc"],
                                    batch_tile=batch_tile)
    logits = logits[:, :kp["num_class"]]
    _gbId = None
    center_v = None
    return logits, target, index, hidden, _gbId, center_v


# --------------------------------------------------------------------------
# Pure-JAX reference (f32) for verification
# --------------------------------------------------------------------------
def _reference(params, x_ids):
    embed = params["embedding"][x_ids]
    feats = []
    for fs in FILTER_SIZES:
        Lout = embed.shape[1] - fs + 1
        acc = jnp.zeros((embed.shape[0], Lout, NUM_FILTERS), jnp.float32)
        for k in range(fs):
            acc = acc + jnp.einsum("ble,eo->blo", embed[:, k:k + Lout, :],
                                   params[f"w{fs}"][k])
        acc = jax.nn.relu(acc + params[f"b{fs}"][None, None, :])
        feats.append(jnp.max(acc, axis=1))
    hidden = jnp.concatenate(feats, axis=1)
    return hidden @ params["wc_t"], hidden


if __name__ == "__main__":
    # Small shapes consistent with the module: conv kernel width is hard-coded
    # to 100 (embedding_size), hidden_size = 150.
    B, L, E = 16, 16, 100
    VOCAB, NUM_CLASS = 50, 4

    key = jax.random.PRNGKey(0)
    k_p, k_x, k_t = jax.random.split(key, 3)
    params = init_params(k_p, VOCAB, E, NUM_CLASS)
    kp = prepare_kernel_params(params)           # hoisted: built once

    x_ids = jax.random.randint(k_x, (B, L), 0, VOCAB, dtype=jnp.int32)
    target = jax.random.randint(k_t, (B,), 0, NUM_CLASS, dtype=jnp.int32)
    index = jnp.arange(B, dtype=jnp.int32)
    original_target = target

    # batch_tile=8 -> 2-step grid even at this small demo batch.
    out, tgt, idx, hidden, _gbId, center_v = modelcnn_forward(
        params, x_ids, target, index, original_target, flag=1,
        kernel_params=kp, batch_tile=8)
    jax.block_until_ready((out, hidden))

    ref_out, ref_hidden = _reference(params, x_ids)
    assert out.shape == (B, NUM_CLASS) and hidden.shape == (B, HIDDEN)
    # bf16 operands / f32 accumulation vs f32 reference -> loose-ish tolerance.
    assert jnp.allclose(hidden, ref_hidden, atol=2e-2, rtol=2e-2), "hidden mismatch"
    assert jnp.allclose(out, ref_out, atol=2e-2, rtol=2e-2), "logits mismatch"

    print("KERNEL_OK")
</pallas_src>

<mosaic_0001>
module attributes {stable_mosaic.version = 11 : i64} {
  func.func @_textcnn_kernel(%arg0: i32, %arg1: memref<8x24x128xbf16, #tpu.memory_space<vmem>>, %arg2: memref<3x256x150xbf16, #tpu.memory_space<vmem>>, %arg3: memref<1x150xf32, #tpu.memory_space<vmem>>, %arg4: memref<1x16x150xf32, #tpu.memory_space<vmem>>, %arg5: memref<150x128xbf16, #tpu.memory_space<vmem>>, %arg6: memref<8x128xf32, #tpu.memory_space<vmem>>, %arg7: memref<8x150xf32, #tpu.memory_space<vmem>>) attributes {dimension_semantics = [#tpu.dimension_semantics<parallel>], iteration_bounds = array<i64: 2>, scalar_prefetch = 0 : i64, scratch_operands = 0 : i64, tpu.core_type = #tpu.core_type<tc>, window_params = [{transform_indices = @transform_0, window_bounds = array<i64: 8, 24, 128>}, {pipeline_mode = #tpu.pipeline_mode<synchronous>, transform_indices = @transform_1, window_bounds = array<i64: 3, 256, 150>}, {pipeline_mode = #tpu.pipeline_mode<synchronous>, transform_indices = @transform_2, window_bounds = array<i64: 1, 150>}, {pipeline_mode = #tpu.pipeline_mode<synchronous>, transform_indices = @transform_3, window_bounds = array<i64: 1, 16, 150>}, {pipeline_mode = #tpu.pipeline_mode<synchronous>, transform_indices = @transform_4, window_bounds = array<i64: 150, 128>}, {transform_indices = @transform_5, window_bounds = array<i64: 8, 128>}, {transform_indices = @transform_6, window_bounds = array<i64: 8, 150>}]} {
    %c0 = arith.constant 0 : index
    %c0_0 = arith.constant 0 : index
    %c0_1 = arith.constant 0 : index
    %0 = vector.load %arg1[%c0, %c0_0, %c0_1] : memref<8x24x128xbf16, #tpu.memory_space<vmem>>, vector<8x24x128xbf16>
    %1 = vector.extract_strided_slice %0 {offsets = [0, 0, 0], sizes = [8, 16, 128], strides = [1, 1, 1]} : vector<8x24x128xbf16> to vector<8x16x128xbf16>
    %2 = vector.extract_strided_slice %0 {offsets = [0, 1, 0], sizes = [8, 16, 128], strides = [1, 1, 1]} : vector<8x24x128xbf16> to vector<8x16x128xbf16>
    %3 = tpu.concatenate %1, %2 in 2 : vector<8x16x128xbf16>, vector<8x16x128xbf16> -> vector<8x16x256xbf16>
    %c0_2 = arith.constant 0 : index
    %c0_3 = arith.constant 0 : index
    %c0_4 = arith.constant 0 : index
    %4 = vector.load %arg2[%c0_2, %c0_3, %c0_4] : memref<3x256x150xbf16, #tpu.memory_space<vmem>>, vector<1x256x150xbf16>
    %5 = vector.shape_cast %4 : vector<1x256x150xbf16> to vector<256x150xbf16>
    %cst = arith.constant dense<0.000000e+00> : vector<8x16x150xf32>
    %6 = tpu.matmul %3, %5, %cst {dimension_numbers = #tpu.dot_dimension_numbers<[2], [0], [0, 1], [1], [0, 0, 0, 1, 1, 1], [], []>} : vector<8x16x256xbf16>, vector<256x150xbf16>, vector<8x16x150xf32> -> vector<8x16x150xf32>
    %c1 = arith.constant 1 : index
    %c0_5 = arith.constant 0 : index
    %c0_6 = arith.constant 0 : index
    %7 = vector.load %arg2[%c1, %c0_5, %c0_6] : memref<3x256x150xbf16, #tpu.memory_space<vmem>>, vector<1x256x150xbf16>
    %8 = vector.shape_cast %7 : vector<1x256x150xbf16> to vector<256x150xbf16>
    %cst_7 = arith.constant dense<0.000000e+00> : vector<8x16x150xf32>
    %9 = tpu.matmul %3, %8, %cst_7 {dimension_numbers = #tpu.dot_dimension_numbers<[2], [0], [0, 1], [1], [0, 0, 0, 1, 1, 1], [], []>} : vector<8x16x256xbf16>, vector<256x150xbf16>, vector<8x16x150xf32> -> vector<8x16x150xf32>
    %c14_i32 = arith.constant 14 : i32
    %10 = tpu.dynamic_rotate %9 by %c14_i32 dim 1 : vector<8x16x150xf32>, i32 -> vector<8x16x150xf32>
    %11 = arith.addf %6, %10 : vector<8x16x150xf32>
    %c2 = arith.constant 2 : index
    %c0_8 = arith.constant 0 : index
    %c0_9 = arith.constant 0 : index
    %12 = vector.load %arg2[%c2, %c0_8, %c0_9] : memref<3x256x150xbf16, #tpu.memory_space<vmem>>, vector<1x256x150xbf16>
    %13 = vector.shape_cast %12 : vector<1x256x150xbf16> to vector<256x150xbf16>
    %cst_10 = arith.constant dense<0.000000e+00> : vector<8x16x150xf32>
    %14 = tpu.matmul %3, %13, %cst_10 {dimension_numbers = #tpu.dot_dimension_numbers<[2], [0], [0, 1], [1], [0, 0, 0, 1, 1, 1], [], []>} : vector<8x16x256xbf16>, vector<256x150xbf16>, vector<8x16x150xf32> -> vector<8x16x150xf32>
    %c12_i32 = arith.constant 12 : i32
    %15 = tpu.dynamic_rotate %14 by %c12_i32 dim 1 : vector<8x16x150xf32>, i32 -> vector<8x16x150xf32>
    %16 = arith.addf %11, %15 : vector<8x16x150xf32>
    %c0_11 = arith.constant 0 : index
    %c0_12 = arith.constant 0 : index
    %c0_13 = arith.constant 0 : index
    %17 = vector.load %arg4[%c0_11, %c0_12, %c0_13] : memref<1x16x150xf32, #tpu.memory_space<vmem>>, vector<1x16x150xf32>
    %18 = vector.broadcast %17 : vector<1x16x150xf32> to vector<8x16x150xf32>
    %19 = arith.addf %16, %18 : vector<8x16x150xf32>
    %cst_14 = arith.constant dense<0xFF800000> : vector<8x150xf32>
    %20 = vector.multi_reduction <maximumf>, %19, %cst_14 [1] : vector<8x16x150xf32> to vector<8x150xf32>
    %c0_15 = arith.constant 0 : index
    %c0_16 = arith.constant 0 : index
    %21 = vector.load %arg3[%c0_15, %c0_16] : memref<1x150xf32, #tpu.memory_space<vmem>>, vector<1x150xf32>
    %22 = vector.broadcast %21 : vector<1x150xf32> to vector<8x150xf32>
    %23 = arith.addf %20, %22 : vector<8x150xf32>
    %cst_17 = arith.constant 0.000000e+00 : f32
    %24 = vector.broadcast %cst_17 : f32 to vector<8x150xf32>
    %25 = arith.maximumf %23, %24 : vector<8x150xf32>
    %c0_18 = arith.constant 0 : index
    %c0_19 = arith.constant 0 : index
    %26 = vector.load %arg7[%c0_18, %c0_19] : memref<8x150xf32, #tpu.memory_space<vmem>>, vector<8x150xf32>
    tpu.vector_store %arg7[%c0_18, %c0_19], %25 {strides = array<i32>} : memref<8x150xf32, #tpu.memory_space<vmem>>, vector<8x150xf32>,
    %27 = arith.truncf %25 : vector<8x150xf32> to vector<8x150xbf16>
    %c0_20 = arith.constant 0 : index
    %c0_21 = arith.constant 0 : index
    %28 = vector.load %arg5[%c0_20, %c0_21] : memref<150x128xbf16, #tpu.memory_space<vmem>>, vector<150x128xbf16>
    %cst_22 = arith.constant dense<0.000000e+00> : vector<8x128xf32>
    %29 = tpu.matmul %27, %28, %cst_22 {dimension_numbers = #tpu.dot_dimension_numbers<[1], [0], [0], [1], [0, 0, 1, 1], [], []>} : vector<8x150xbf16>, vector<150x128xbf16>, vector<8x128xf32> -> vector<8x128xf32>
    %c0_23 = arith.constant 0 : index
    %c0_24 = arith.constant 0 : index
    %30 = vector.load %arg6[%c0_23, %c0_24] : memref<8x128xf32, #tpu.memory_space<vmem>>, vector<8x128xf32>
    tpu.vector_store %arg6[%c0_23, %c0_24], %29 {strides = array<i32>} : memref<8x128xf32, #tpu.memory_space<vmem>>, vector<8x128xf32>,
    return
  }
  func.func @transform_0(%arg0: i32) -> (i32, i32, i32) {
    %c0_i32 = arith.constant 0 : i32
    %c0_i32_0 = arith.constant 0 : i32
    %c0_i32_1 = arith.constant 0 : i32
    return %arg0, %c0_i32, %c0_i32_0 : i32, i32, i32
  }
  func.func @transform_1(%arg0: i32) -> (i32, i32, i32) {
    %c0_i32 = arith.constant 0 : i32
    %c0_i32_0 = arith.constant 0 : i32
    %c0_i32_1 = arith.constant 0 : i32
    %c0_i32_2 = arith.constant 0 : i32
    return %c0_i32, %c0_i32_0, %c0_i32_1 : i32, i32, i32
  }
  func.func @transform_2(%arg0: i32) -> (i32, i32) {
    %c0_i32 = arith.constant 0 : i32
    %c0_i32_0 = arith.constant 0 : i32
    %c0_i32_1 = arith.constant 0 : i32
    return %c0_i32, %c0_i32_0 : i32, i32
  }
  func.func @transform_3(%arg0: i32) -> (i32, i32, i32) {
    %c0_i32 = arith.constant 0 : i32
    %c0_i32_0 = arith.constant 0 : i32
    %c0_i32_1 = arith.constant 0 : i32
    %c0_i32_2 = arith.constant 0 : i32
    return %c0_i32, %c0_i32_0, %c0_i32_1 : i32, i32, i32
  }
  func.func @transform_4(%arg0: i32) -> (i32, i32) {
    %c0_i32 = arith.constant 0 : i32
    %c0_i32_0 = arith.constant 0 : i32
    %c0_i32_1 = arith.constant 0 : i32
    return %c0_i32, %c0_i32_0 : i32, i32
  }
  func.func @transform_5(%arg0: i32) -> (i32, i32) {
    %c0_i32 = arith.constant 0 : i32
    %c0_i32_0 = arith.constant 0 : i32
    return %arg0, %c0_i32 : i32, i32
  }
  func.func @transform_6(%arg0: i32) -> (i32, i32) {
    %c0_i32 = arith.constant 0 : i32
    %c0_i32_0 = arith.constant 0 : i32
    return %arg0, %c0_i32 : i32, i32
  }
}

</mosaic_0001>

<llo_original>
// kernel: tpu_custom_call.1
$region0: #{tpu_custom_call.1}
  #allocation0 [shape = 'u32[]', space=smem, size = 0x4, offset = 0x4, fixed_abs, tag = 'smem constant byte address 0x4 - core index']
  #allocation1 [shape = 'u32[72,128]{1,0:T(1,128)}', space=vmem, size = 0x9000, scoped, tag = 'internal scratch']
  %s0 = inlined_call_operand.vmem [shape: bf16[16,24,128], index: 0, kind: input, shape index: {}]
  %s1 = inlined_call_operand.vmem [shape: bf16[3,256,150], index: 1, kind: input, shape index: {}]
  %s2 = inlined_call_operand.vmem [shape: f32[1,150], index: 2, kind: input, shape index: {}]
  %s3 = inlined_call_operand.vmem [shape: f32[1,16,150], index: 3, kind: input, shape index: {}]
  %s4 = inlined_call_operand.vmem [shape: bf16[150,128], index: 4, kind: input, shape index: {}]
  %s5 = inlined_call_operand.hbm [shape: f32[16,128], index: 5, kind: output, shape index: {0}]
  %s6 = inlined_call_operand.hbm [shape: f32[16,150], index: 6, kind: output, shape index: {1}]
  %7 = xla_tuple %s5, %s6
  %s8 = sld [smem:[#allocation0]]
  $region61: #{tpu_custom_call.1} parent=0
    _
  %s10 = ssub.s32 1, %s8
  %s11 = scalar_select 0, %s10, %s8
  $region1: #{tpu_custom_call.1} parent=0
    #allocation2 [shape = 'u8[8192]{0}', space=vmem, size = 0x2000, scoped, tag = 'output window, operand 0']
    #allocation3 [shape = 's32[2]{0}', space=sflag, size = 0x8, scoped, tag = 'scoped memory for tpu_custom_call.1']
    #allocation4 [shape = 'u8[16384]{0}', space=vmem, size = 0x4000, scoped, tag = 'output window, operand 1']
    #allocation5 [shape = 's32[2]{0}', space=sflag, size = 0x8, scoped, tag = 'scoped memory for tpu_custom_call.1']
    %12 = vsyncpa [#allocation3], 0
    %s13 = scalar_lea.sflag [#allocation3], 1
    %14 = vsyncpa %s13, 0
    %15 = vsyncpa [#allocation5], 0
    %s16 = scalar_lea.sflag [#allocation5], 1
    %17 = vsyncpa %s16, 0
    loop: start=0, step=1, limit=4
    $region2: #{tpu_custom_call.1} parent=1 // loop_pre_header
      _
    $region3: #{tpu_custom_call.1} parent=1 // loop_header
      %s19 = sphi 0, %s23
      %p20 = scmp.ge.s32.totalorder %s19, 4
      %s29 = sphi 0, %s31
      %s32 = sphi 0, %s29
      %s33 = sphi 0, %s32
      %s49 = sphi 0, %s33
      %s53 = sphi 0, %s53
      %s55 = sphi 0, %s53
      %s56 = sphi 0, %s55
      %s70 = sphi 0, %s56
      %s74 = sphi 0, %s74
      %s76 = sphi 0, %s74
      %s77 = sphi 0, %s76
      %s91 = sphi 0, %s77
      %s95 = sphi 0, %s95
      %s97 = sphi 0, %s95
      %s98 = sphi 0, %s97
      %s112 = sphi 0, %s98
      %s116 = sphi 0, %s116
      %s118 = sphi 0, %s116
      %s119 = sphi 0, %s118
      %s133 = sphi 0, %s119
      %s139 = sphi 0, %s141
      %s142 = sphi 0, %s139
      %s143 = sphi 0, %s142
      %s159 = sphi 0, %s143
      %s165 = sphi 0, %s167
      %s168 = sphi 0, %s165
      %s169 = sphi 0, %s168
      %s185 = sphi 0, %s169
    $region4: #{tpu_custom_call.1} parent=1 // loop_header_branch
      %22 = sbr.rel (%p20) target = $region8
    $region5: #{tpu_custom_call.1} parent=1 // loop_body
      %s24 = ssub.s32 %s19, 1
      %s25 = ssub.s32 %s19, 2
      %s26 = sadd.s32 %s19, 1
      %s27 = ssub.s32 %s19, %s26
      %p28 = scmp.eq.s32.totalorder %s27, 0
      %s30 = sadd.s32 %s29, 1
      %s31 = scalar_select %p28, %s29, %s30
      %p34 = pneg %p28
      %p35 = scmp.eq.s32.totalorder %s19, 1
      %p36 = por %p34, %p35
      %p37 = scmp.ne.s32.totalorder %s29, %s32
      %p38 = scmp.eq.s32.totalorder %s19, 0
      %p39 = por %p37, %p38
      %p40 = scmp.ne.s32.totalorder %s29, %s32
      %p41 = scmp.eq.s32.totalorder %s24, 1
      %p42 = por %p40, %p41
      %p43 = scmp.ne.s32.totalorder %s32, %s33
      %p44 = scmp.eq.s32.totalorder %s24, 0
      %p45 = por %p43, %p44
      %p46 = scmp.ne.s32.totalorder %s32, %s33
      %p47 = scmp.eq.s32.totalorder %s25, 1
      %p48 = por %p46, %p47
      %p50 = scmp.ne.s32.totalorder %s33, %s49
      %p51 = scmp.eq.s32.totalorder %s25, 0
      %p52 = por %p50, %p51
      %s54 = sadd.s32 %s53, 1
      %p57 = scmp.eq.s32.totalorder %s19, 1
      %p58 = scmp.ne.s32.totalorder %s53, %s55
      %p59 = scmp.eq.s32.totalorder %s19, 0
      %p60 = por %p58, %p59
      %p61 = scmp.ne.s32.totalorder %s53, %s55
      %p62 = scmp.eq.s32.totalorder %s24, 1
      %p63 = por %p61, %p62
      %p64 = scmp.ne.s32.totalorder %s55, %s56
      %p65 = scmp.eq.s32.totalorder %s24, 0
      %p66 = por %p64, %p65
      %p67 = scmp.ne.s32.totalorder %s55, %s56
      %p68 = scmp.eq.s32.totalorder %s25, 1
      %p69 = por %p67, %p68
      %p71 = scmp.ne.s32.totalorder %s56, %s70
      %p72 = scmp.eq.s32.totalorder %s25, 0
      %p73 = por %p71, %p72
      %s75 = sadd.s32 %s74, 1
      %p78 = scmp.eq.s32.totalorder %s19, 1
      %p79 = scmp.ne.s32.totalorder %s74, %s76
      %p80 = scmp.eq.s32.totalorder %s19, 0
      %p81 = por %p79, %p80
      %p82 = scmp.ne.s32.totalorder %s74, %s76
      %p83 = scmp.eq.s32.totalorder %s24, 1
      %p84 = por %p82, %p83
      %p85 = scmp.ne.s32.totalorder %s76, %s77
      %p86 = scmp.eq.s32.totalorder %s24, 0
      %p87 = por %p85, %p86
      %p88 = scmp.ne.s32.totalorder %s76, %s77
      %p89 = scmp.eq.s32.totalorder %s25, 1
      %p90 = por %p88, %p89
      %p92 = scmp.ne.s32.totalorder %s77, %s91
      %p93 = scmp.eq.s32.totalorder %s25, 0
      %p94 = por %p92, %p93
      %s96 = sadd.s32 %s95, 1
      %p99 = scmp.eq.s32.totalorder %s19, 1
      %p100 = scmp.ne.s32.totalorder %s95, %s97
      %p101 = scmp.eq.s32.totalorder %s19, 0
      %p102 = por %p100, %p101
      %p103 = scmp.ne.s32.totalorder %s95, %s97
      %p104 = scmp.eq.s32.totalorder %s24, 1
      %p105 = por %p103, %p104
      %p106 = scmp.ne.s32.totalorder %s97, %s98
      %p107 = scmp.eq.s32.totalorder %s24, 0
      %p108 = por %p106, %p107
      %p109 = scmp.ne.s32.totalorder %s97, %s98
      %p110 = scmp.eq.s32.totalorder %s25, 1
      %p111 = por %p109, %p110
      %p113 = scmp.ne.s32.totalorder %s98, %s112
      %p114 = scmp.eq.s32.totalorder %s25, 0
      %p115 = por %p113, %p114
      %s117 = sadd.s32 %s116, 1
      %p120 = scmp.eq.s32.totalorder %s19, 1
      %p121 = scmp.ne.s32.totalorder %s116, %s118
      %p122 = scmp.eq.s32.totalorder %s19, 0
      %p123 = por %p121, %p122
      %p124 = scmp.ne.s32.totalorder %s116, %s118
      %p125 = scmp.eq.s32.totalorder %s24, 1
      %p126 = por %p124, %p125
      %p127 = scmp.ne.s32.totalorder %s118, %s119
      %p128 = scmp.eq.s32.totalorder %s24, 0
      %p129 = por %p127, %p128
      %p130 = scmp.ne.s32.totalorder %s118, %s119
      %p131 = scmp.eq.s32.totalorder %s25, 1
      %p132 = por %p130, %p131
      %p134 = scmp.ne.s32.totalorder %s119, %s133
      %p135 = scmp.eq.s32.totalorder %s25, 0
      %p136 = por %p134, %p135
      %s137 = ssub.s32 %s19, %s26
      %p138 = scmp.eq.s32.totalorder %s137, 0
      %s140 = sadd.s32 %s139, 1
      %s141 = scalar_select %p138, %s139, %s140
      %p144 = pneg %p138
      %p145 = scmp.eq.s32.totalorder %s19, 1
      %p146 = por %p144, %p145
      %p147 = scmp.ne.s32.totalorder %s139, %s142
      %p148 = scmp.eq.s32.totalorder %s19, 0
      %p149 = por %p147, %p148
      %p150 = scmp.ne.s32.totalorder %s139, %s142
      %p151 = scmp.eq.s32.totalorder %s24, 1
      %p152 = por %p150, %p151
      %p153 = scmp.ne.s32.totalorder %s142, %s143
      %p154 = scmp.eq.s32.totalorder %s24, 0
      %p155 = por %p153, %p154
      %p156 = scmp.ne.s32.totalorder %s142, %s143
      %p157 = scmp.eq.s32.totalorder %s25, 1
      %p158 = por %p156, %p157
      %p160 = scmp.ne.s32.totalorder %s143, %s159
      %p161 = scmp.eq.s32.totalorder %s25, 0
      %p162 = por %p160, %p161
      %s163 = ssub.s32 %s19, %s26
      %p164 = scmp.eq.s32.totalorder %s163, 0
      %s166 = sadd.s32 %s165, 1
      %s167 = scalar_select %p164, %s165, %s166
      %p170 = pneg %p164
      %p171 = scmp.eq.s32.totalorder %s19, 1
      %p172 = por %p170, %p171
      %p173 = scmp.ne.s32.totalorder %s165, %s168
      %p174 = scmp.eq.s32.totalorder %s19, 0
      %p175 = por %p173, %p174
      %p176 = scmp.ne.s32.totalorder %s165, %s168
      %p177 = scmp.eq.s32.totalorder %s24, 1
      %p178 = por %p176, %p177
      %p179 = scmp.ne.s32.totalorder %s168, %s169
      %p180 = scmp.eq.s32.totalorder %s24, 0
      %p181 = por %p179, %p180
      %p182 = scmp.ne.s32.totalorder %s168, %s169
      %p183 = scmp.eq.s32.totalorder %s25, 1
      %p184 = por %p182, %p183
      %p186 = scmp.ne.s32.totalorder %s169, %s185
      %p187 = scmp.eq.s32.totalorder %s25, 0
      %p188 = por %p186, %p187
      %p189 = scmp.le.s32.totalorder 1, %s19
      %p190 = scmp.lt.s32.totalorder %s19, 3
      %p191 = pnand %p189, %p190
      %p192 = pneg %p191
      // Predicated region
      $region9: #{tpu_custom_call.1} parent=5 // pred_check
        _
      $region10: #{tpu_custom_call.1} parent=5 // pred_check_branch
        %194 = sbr.rel (%p191) target = $region12
      $region11: #{tpu_custom_call.1} parent=5 // pred_region
        %s195 = ssub.s32 %s19, 1
        // Predicated region
        $region13: #{tpu_custom_call.1} parent=11 // pred_check
          %p196 = pneg %p66
        $region14: #{tpu_custom_call.1} parent=11 // pred_check_branch
          %198 = sbr.rel (%p196) target = $region16
        $region15: #{tpu_custom_call.1} parent=11 // pred_region
          _
        $region16: #{tpu_custom_call.1} parent=11 // pred_fallthru
          _
        // Predicated region
        $region17: #{tpu_custom_call.1} parent=11 // pred_check
          %p199 = pneg %p87
        $region18: #{tpu_custom_call.1} parent=11 // pred_check_branch
          %201 = sbr.rel (%p199) target = $region20
        $region19: #{tpu_custom_call.1} parent=11 // pred_region
          _
        $region20: #{tpu_custom_call.1} parent=11 // pred_fallthru
          _
        // Predicated region
        $region21: #{tpu_custom_call.1} parent=11 // pred_check
          %p202 = pneg %p108
        $region22: #{tpu_custom_call.1} parent=11 // pred_check_branch
          %204 = sbr.rel (%p202) target = $region24
        $region23: #{tpu_custom_call.1} parent=11 // pred_region
          _
        $region24: #{tpu_custom_call.1} parent=11 // pred_fallthru
          _
        // Predicated region
        $region25: #{tpu_custom_call.1} parent=11 // pred_check
          %p205 = pneg %p129
        $region26: #{tpu_custom_call.1} parent=11 // pred_check_branch
          %207 = sbr.rel (%p205) target = $region28
        $region27: #{tpu_custom_call.1} parent=11 // pred_region
          _
        $region28: #{tpu_custom_call.1} parent=11 // pred_fallthru
          _
      $region12: #{tpu_custom_call.1} parent=5 // pred_fallthru
        _
      %p208 = scmp.lt.s32.totalorder %s19, 2
      // Predicated region
      $region29: #{tpu_custom_call.1} parent=5 // pred_check
        %p209 = pneg %p208
      $region30: #{tpu_custom_call.1} parent=5 // pred_check_branch
        %211 = sbr.rel (%p209) target = $region32
      $region31: #{tpu_custom_call.1} parent=5 // pred_region
        // Predicated region
        $region33: #{tpu_custom_call.1} parent=31 // pred_check
          %p212 = pneg %p39
        $region34: #{tpu_custom_call.1} parent=31 // pred_check_branch
          %214 = sbr.rel (%p212) target = $region36
        $region35: #{tpu_custom_call.1} parent=31 // pred_region
          %s215 = smul.u32 8, %s19
          %p216 = scmp.lt.s32.totalorder %s215, 15
          %s217 = scalar_select %p216, %s215, 15
          %s218 = smul.addr %s217, 3
          %s219 = smul.addr %s218, 4
          %s220 = scalar_lea.vmem %s0, %s219
          %s221 = smul.u32 8, %s19
        $region36: #{tpu_custom_call.1} parent=31 // pred_fallthru
          _
      $region32: #{tpu_custom_call.1} parent=5 // pred_fallthru
        _
      %p222 = scmp.le.s32.totalorder 1, %s19
      %p223 = scmp.lt.s32.totalorder %s19, 3
      %p224 = pnand %p222, %p223
      %p225 = pneg %p224
      // Predicated region
      $region37: #{tpu_custom_call.1} parent=5 // pred_check
        _
      $region38: #{tpu_custom_call.1} parent=5 // pred_check_branch
        %227 = sbr.rel (%p224) target = $region40
      $region39: #{tpu_custom_call.1} parent=5 // pred_region
        %s228 = ssub.s32 %s19, 1
        %s229 = smul.u32 8, %s24
        %p230 = scmp.lt.s32.totalorder %s229, 15
        %s231 = scalar_select %p230, %s229, 15
        %s232 = smul.addr %s231, 3
        %s233 = smul.addr %s232, 4
        %s234 = scalar_lea.vmem %s0, %s233
        %p235 = pneg %p45
        %p236 = pneg %p42
        %p237 = pneg %p66
        %p238 = pneg %p63
        %p239 = pneg %p87
        %p240 = pneg %p84
        %p241 = pneg %p108
        %p242 = pneg %p105
        %p243 = pneg %p129
        %p244 = pneg %p126
        %p245 = pneg %p155
        %p246 = pneg %p152
        %s247 = sand.u32 %s142, 1
        %s248 = scalar_lea.sflag [#allocation3], %s247
        %s249 = sand.u32 %s142, 1
        %s250 = smul.addr %s249, 8
        %s251 = scalar_lea.vmem [#allocation2], %s250
        %p252 = pneg %p181
        %p253 = pneg %p178
        %s254 = sand.u32 %s168, 1
        %s255 = scalar_lea.sflag [#allocation5], %s254
        %s256 = sand.u32 %s168, 1
        %s257 = smul.addr %s256, 16
        %s258 = scalar_lea.vmem [#allocation4], %s257
        %s259 = smul.u32 8, %s24
        %p260 = scmp.lt.s32.totalorder %s259, 15
        %s261 = scalar_select %p260, %s259, 15
        %s262 = smul.addr %s261, 3
        %s263 = smul.addr %s262, 4
        %s264 = scalar_lea.vmem %s0, %s263
        %s265 = smul.u32 8, %s24
        %v267 = vld [vmem:[%s264] sm:$0xf]
        %v268 = vld [vmem:[%s264 + $0x4] sm:$0xf]
        %v269 = vld [vmem:[%s264 + $0x8] sm:$0xf]
        %v270 = vld [vmem:[%s264 + $0xc] sm:$0xf]
        %v271 = vld [vmem:[%s264 + $0x10] sm:$0xf]
        %v272 = vld [vmem:[%s264 + $0x14] sm:$0xf]
        %v273 = vld [vmem:[%s264 + $0x18] sm:$0xf]
        %v274 = vld [vmem:[%s264 + $0x1c] sm:$0xf]
        %v275 = vld [vmem:[%s264 + $0x20] sm:$0xf]
        %v276 = vld [vmem:[%s264 + $0x24] sm:$0xf]
        %v277 = vld [vmem:[%s264 + $0x28] sm:$0xf]
        %v278 = vld [vmem:[%s264 + $0x2c] sm:$0xf]
        %v279 = vld [vmem:[%s264 + $0x30] sm:$0xf]
        %v280 = vld [vmem:[%s264 + $0x34] sm:$0xf]
        %v281 = vld [vmem:[%s264 + $0x38] sm:$0xf]
        %v282 = vld [vmem:[%s264 + $0x3c] sm:$0xf]
        %v283 = vld [vmem:[%s264 + $0x40] sm:$0xf]
        %v284 = vld [vmem:[%s264 + $0x44] sm:$0xf]
        %v285 = vld [vmem:[%s264 + $0x48] sm:$0xf]
        %v286 = vld [vmem:[%s264 + $0x4c] sm:$0xf]
        %v287 = vld [vmem:[%s264 + $0x50] sm:$0xf]
        %v288 = vld [vmem:[%s264 + $0x54] sm:$0xf]
        %v289 = vld [vmem:[%s264 + $0x58] sm:$0xf]
        %v290 = vld [vmem:[%s264 + $0x5c] sm:$0xf]
        %v307 = vunpack.c.l.b16 %v267
        %v308 = vunpack.c.l.b16 %v268
        %v309 = vunpack.c.l.b16 %v270
        %v310 = vunpack.c.l.b16 %v271
        %v311 = vunpack.c.l.b16 %v273
        %v312 = vunpack.c.l.b16 %v274
        %v313 = vunpack.c.l.b16 %v276
        %v314 = vunpack.c.l.b16 %v277
        %v315 = vunpack.c.l.b16 %v279
        %v316 = vunpack.c.l.b16 %v280
        %v317 = vunpack.c.l.b16 %v282
        %v318 = vunpack.c.l.b16 %v283
        %v319 = vunpack.c.l.b16 %v285
        %v320 = vunpack.c.l.b16 %v286
        %v321 = vunpack.c.l.b16 %v288
        %v322 = vunpack.c.l.b16 %v289
        %v323 = vpack.c.b16 %v308, %v307
        %v324 = vpack.c.b16 %v310, %v309
        %v325 = vpack.c.b16 %v312, %v311
        %v326 = vpack.c.b16 %v314, %v313
        %v327 = vpack.c.b16 %v316, %v315
        %v328 = vpack.c.b16 %v318, %v317
        %v329 = vpack.c.b16 %v320, %v319
        %v330 = vpack.c.b16 %v322, %v321
        %v347 = vunpack.c.l.b16 %v269
        %v348 = vunpack.c.l.b16 %v272
        %v349 = vunpack.c.l.b16 %v275
        %v350 = vunpack.c.l.b16 %v278
        %v351 = vunpack.c.l.b16 %v281
        %v352 = vunpack.c.l.b16 %v284
        %v353 = vunpack.c.l.b16 %v287
        %v354 = vunpack.c.l.b16 %v290
        %v355 = vpack.c.b16 %v347, %v347
        %v356 = vpack.c.b16 %v348, %v348
        %v357 = vpack.c.b16 %v349, %v349
        %v358 = vpack.c.b16 %v350, %v350
        %v359 = vpack.c.b16 %v351, %v351
        %v360 = vpack.c.b16 %v352, %v352
        %v361 = vpack.c.b16 %v353, %v353
        %v362 = vpack.c.b16 %v354, %v354
        %vm363 = vsmask.f32 7424
        %v365 = vshrl.u32 %v323, 16
        %v367 = vshll.u32 %v323, 16
        %v369 = vrot.slane %v367, 1
        %v370 = vor.u32 %v365, %v369
        %v372 = vshll.u32 %v355, 16
        %v374 = vrot.slane %v372, 1
        %v375 = vsel %vm363, %v370, %v374
        %v377 = vshrl.u32 %v324, 16
        %v379 = vshll.u32 %v324, 16
        %v381 = vrot.slane %v379, 1
        %v382 = vor.u32 %v377, %v381
        %v384 = vshll.u32 %v356, 16
        %v386 = vrot.slane %v384, 1
        %v387 = vsel %vm363, %v382, %v386
        %v389 = vshrl.u32 %v325, 16
        %v391 = vshll.u32 %v325, 16
        %v393 = vrot.slane %v391, 1
        %v394 = vor.u32 %v389, %v393
        %v396 = vshll.u32 %v357, 16
        %v398 = vrot.slane %v396, 1
        %v399 = vsel %vm363, %v394, %v398
        %v401 = vshrl.u32 %v326, 16
        %v403 = vshll.u32 %v326, 16
        %v405 = vrot.slane %v403, 1
        %v406 = vor.u32 %v401, %v405
        %v408 = vshll.u32 %v358, 16
        %v410 = vrot.slane %v408, 1
        %v411 = vsel %vm363, %v406, %v410
        %v413 = vshrl.u32 %v327, 16
        %v415 = vshll.u32 %v327, 16
        %v417 = vrot.slane %v415, 1
        %v418 = vor.u32 %v413, %v417
        %v420 = vshll.u32 %v359, 16
        %v422 = vrot.slane %v420, 1
        %v423 = vsel %vm363, %v418, %v422
        %v425 = vshrl.u32 %v328, 16
        %v427 = vshll.u32 %v328, 16
        %v429 = vrot.slane %v427, 1
        %v430 = vor.u32 %v425, %v429
        %v432 = vshll.u32 %v360, 16
        %v434 = vrot.slane %v432, 1
        %v435 = vsel %vm363, %v430, %v434
        %v437 = vshrl.u32 %v329, 16
        %v439 = vshll.u32 %v329, 16
        %v441 = vrot.slane %v439, 1
        %v442 = vor.u32 %v437, %v441
        %v444 = vshll.u32 %v361, 16
        %v446 = vrot.slane %v444, 1
        %v447 = vsel %vm363, %v442, %v446
        %v449 = vshrl.u32 %v330, 16
        %v451 = vshll.u32 %v330, 16
        %v453 = vrot.slane %v451, 1
        %v454 = vor.u32 %v449, %v453
        %v456 = vshll.u32 %v362, 16
        %v458 = vrot.slane %v456, 1
        %v459 = vsel %vm363, %v454, %v458
        %v468 = vld [vmem:[%s1] sm:$0xff]
        %v469 = vld [vmem:[%s1 + $0x8] sm:$0xff]
        %v470 = vld [vmem:[%s1 + $0x10] sm:$0xff]
        %v471 = vld [vmem:[%s1 + $0x18] sm:$0xff]
        %v472 = vld [vmem:[%s1 + $0x20] sm:$0xff]
        %v473 = vld [vmem:[%s1 + $0x28] sm:$0xff]
        %v474 = vld [vmem:[%s1 + $0x30] sm:$0xff]
        %v475 = vld [vmem:[%s1 + $0x38] sm:$0xff]
        %v476 = vld [vmem:[%s1 + $0x40] sm:$0xff]
        %v477 = vld [vmem:[%s1 + $0x48] sm:$0xff]
        %v478 = vld [vmem:[%s1 + $0x50] sm:$0xff]
        %v479 = vld [vmem:[%s1 + $0x58] sm:$0xff]
        %v480 = vld [vmem:[%s1 + $0x60] sm:$0xff]
        %v481 = vld [vmem:[%s1 + $0x68] sm:$0xff]
        %v482 = vld [vmem:[%s1 + $0x70] sm:$0xff]
        %v483 = vld [vmem:[%s1 + $0x78] sm:$0xff]
        %v484 = vld [vmem:[%s1 + $0x80] sm:$0xff]
        %v485 = vld [vmem:[%s1 + $0x88] sm:$0xff]
        %v486 = vld [vmem:[%s1 + $0x90] sm:$0xff]
        %v487 = vld [vmem:[%s1 + $0x98] sm:$0xff]
        %v488 = vld [vmem:[%s1 + $0xa0] sm:$0xff]
        %v489 = vld [vmem:[%s1 + $0xa8] sm:$0xff]
        %v490 = vld [vmem:[%s1 + $0xb0] sm:$0xff]
        %v491 = vld [vmem:[%s1 + $0xb8] sm:$0xff]
        %v492 = vld [vmem:[%s1 + $0xc0] sm:$0xff]
        %v493 = vld [vmem:[%s1 + $0xc8] sm:$0xff]
        %v494 = vld [vmem:[%s1 + $0xd0] sm:$0xff]
        %v495 = vld [vmem:[%s1 + $0xd8] sm:$0xff]
        %v496 = vld [vmem:[%s1 + $0xe0] sm:$0xff]
        %v497 = vld [vmem:[%s1 + $0xe8] sm:$0xff]
        %v498 = vld [vmem:[%s1 + $0xf0] sm:$0xff]
        %v499 = vld [vmem:[%s1 + $0xf8] sm:$0xff]
        %s500 = scalar_lea.vmem %s1, 256
        %v501 = vld [vmem:[%s500] sm:$0xff]
        %v502 = vld [vmem:[%s500 + $0x8] sm:$0xff]
        %v503 = vld [vmem:[%s500 + $0x10] sm:$0xff]
        %v504 = vld [vmem:[%s500 + $0x18] sm:$0xff]
        %v505 = vld [vmem:[%s500 + $0x20] sm:$0xff]
        %v506 = vld [vmem:[%s500 + $0x28] sm:$0xff]
        %v507 = vld [vmem:[%s500 + $0x30] sm:$0xff]
        %v508 = vld [vmem:[%s500 + $0x38] sm:$0xff]
        %v509 = vld [vmem:[%s500 + $0x40] sm:$0xff]
        %v510 = vld [vmem:[%s500 + $0x48] sm:$0xff]
        %v511 = vld [vmem:[%s500 + $0x50] sm:$0xff]
        %v512 = vld [vmem:[%s500 + $0x58] sm:$0xff]
        %v513 = vld [vmem:[%s500 + $0x60] sm:$0xff]
        %v514 = vld [vmem:[%s500 + $0x68] sm:$0xff]
        %v515 = vld [vmem:[%s500 + $0x70] sm:$0xff]
        %v516 = vld [vmem:[%s500 + $0x78] sm:$0xff]
        %v517 = vld [vmem:[%s500 + $0x80] sm:$0xff]
        %v518 = vld [vmem:[%s500 + $0x88] sm:$0xff]
        %v519 = vld [vmem:[%s500 + $0x90] sm:$0xff]
        %v520 = vld [vmem:[%s500 + $0x98] sm:$0xff]
        %v521 = vld [vmem:[%s500 + $0xa0] sm:$0xff]
        %v522 = vld [vmem:[%s500 + $0xa8] sm:$0xff]
        %v523 = vld [vmem:[%s500 + $0xb0] sm:$0xff]
        %v524 = vld [vmem:[%s500 + $0xb8] sm:$0xff]
        %v525 = vld [vmem:[%s500 + $0xc0] sm:$0xff]
        %v526 = vld [vmem:[%s500 + $0xc8] sm:$0xff]
        %v527 = vld [vmem:[%s500 + $0xd0] sm:$0xff]
        %v528 = vld [vmem:[%s500 + $0xd8] sm:$0xff]
        %v529 = vld [vmem:[%s500 + $0xe0] sm:$0xff]
        %v530 = vld [vmem:[%s500 + $0xe8] sm:$0xff]
        %v531 = vld [vmem:[%s500 + $0xf0] sm:$0xff]
        %v532 = vld [vmem:[%s500 + $0xf8] sm:$0xff]
        %v565 = vunpack.c.l.b16 %v501
        %v566 = vunpack.c.h.b16 %v501
        %v567 = vunpack.c.l.b16 %v502
        %v568 = vunpack.c.h.b16 %v502
        %v569 = vunpack.c.l.b16 %v503
        %v570 = vunpack.c.h.b16 %v503
        %v571 = vunpack.c.l.b16 %v504
        %v572 = vunpack.c.h.b16 %v504
        %v573 = vunpack.c.l.b16 %v505
        %v574 = vunpack.c.h.b16 %v505
        %v575 = vunpack.c.l.b16 %v506
        %v576 = vunpack.c.h.b16 %v506
        %v577 = vunpack.c.l.b16 %v507
        %v578 = vunpack.c.h.b16 %v507
        %v579 = vunpack.c.l.b16 %v508
        %v580 = vunpack.c.h.b16 %v508
        %v581 = vunpack.c.l.b16 %v509
        %v582 = vunpack.c.h.b16 %v509
        %v583 = vunpack.c.l.b16 %v510
        %v584 = vunpack.c.h.b16 %v510
        %v585 = vunpack.c.l.b16 %v511
        %v586 = vunpack.c.h.b16 %v511
        %v587 = vunpack.c.l.b16 %v512
        %v588 = vunpack.c.h.b16 %v512
        %v589 = vunpack.c.l.b16 %v513
        %v590 = vunpack.c.h.b16 %v513
        %v591 = vunpack.c.l.b16 %v514
        %v592 = vunpack.c.h.b16 %v514
        %v593 = vunpack.c.l.b16 %v515
        %v594 = vunpack.c.h.b16 %v515
        %v595 = vunpack.c.l.b16 %v516
        %v596 = vunpack.c.h.b16 %v516
        %v597 = vunpack.c.l.b16 %v517
        %v598 = vunpack.c.h.b16 %v517
        %v599 = vunpack.c.l.b16 %v518
        %v600 = vunpack.c.h.b16 %v518
        %v601 = vunpack.c.l.b16 %v519
        %v602 = vunpack.c.h.b16 %v519
        %v603 = vunpack.c.l.b16 %v520
        %v604 = vunpack.c.h.b16 %v520
        %v605 = vunpack.c.l.b16 %v521
        %v606 = vunpack.c.h.b16 %v521
        %v607 = vunpack.c.l.b16 %v522
        %v608 = vunpack.c.h.b16 %v522
        %v609 = vunpack.c.l.b16 %v523
        %v610 = vunpack.c.h.b16 %v523
        %v611 = vunpack.c.l.b16 %v524
        %v612 = vunpack.c.h.b16 %v524
        %v613 = vunpack.c.l.b16 %v525
        %v614 = vunpack.c.h.b16 %v525
        %v615 = vunpack.c.l.b16 %v526
        %v616 = vunpack.c.h.b16 %v526
        %v617 = vunpack.c.l.b16 %v527
        %v618 = vunpack.c.h.b16 %v527
        %v619 = vunpack.c.l.b16 %v528
        %v620 = vunpack.c.h.b16 %v528
        %v621 = vunpack.c.l.b16 %v529
        %v622 = vunpack.c.h.b16 %v529
        %v623 = vunpack.c.l.b16 %v530
        %v624 = vunpack.c.h.b16 %v530
        %v625 = vunpack.c.l.b16 %v531
        %v626 = vunpack.c.h.b16 %v531
        %v627 = vunpack.c.l.b16 %v532
        %v628 = vunpack.c.h.b16 %v532
        %v629 = vpack.c.b16 %v567, %v565
        %v630 = vpack.c.b16 %v568, %v566
        %v631 = vpack.c.b16 %v571, %v569
        %v632 = vpack.c.b16 %v572, %v570
        %v633 = vpack.c.b16 %v575, %v573
        %v634 = vpack.c.b16 %v576, %v574
        %v635 = vpack.c.b16 %v579, %v577
        %v636 = vpack.c.b16 %v580, %v578
        %v637 = vpack.c.b16 %v583, %v581
        %v638 = vpack.c.b16 %v584, %v582
        %v639 = vpack.c.b16 %v587, %v585
        %v640 = vpack.c.b16 %v588, %v586
        %v641 = vpack.c.b16 %v591, %v589
        %v642 = vpack.c.b16 %v592, %v590
        %v643 = vpack.c.b16 %v595, %v593
        %v644 = vpack.c.b16 %v596, %v594
        %v645 = vpack.c.b16 %v599, %v597
        %v646 = vpack.c.b16 %v600, %v598
        %v647 = vpack.c.b16 %v603, %v601
        %v648 = vpack.c.b16 %v604, %v602
        %v649 = vpack.c.b16 %v607, %v605
        %v650 = vpack.c.b16 %v608, %v606
        %v651 = vpack.c.b16 %v611, %v609
        %v652 = vpack.c.b16 %v612, %v610
        %v653 = vpack.c.b16 %v615, %v613
        %v654 = vpack.c.b16 %v616, %v614
        %v655 = vpack.c.b16 %v619, %v617
        %v656 = vpack.c.b16 %v620, %v618
        %v657 = vpack.c.b16 %v623, %v621
        %v658 = vpack.c.b16 %v624, %v622
        %v659 = vpack.c.b16 %v627, %v625
        %v660 = vpack.c.b16 %v628, %v626
        %693 = vmatpush.bf16.msra.mxu0 %v643
        %694 = vmatpush.bf16.msra.mxu0 %v641
        %695 = vmatpush.bf16.msra.mxu0 %v639
        %696 = vmatpush.bf16.msra.mxu0 %v637
        %697 = vmatpush.bf16.msra.mxu0 %v635
        %698 = vmatpush.bf16.msra.mxu0 %v633
        %699 = vmatpush.bf16.msra.mxu0 %v631
        %700 = vmatpush.bf16.msra.mxu0 %v629
        %701 = vmatmul.bf16.gmra.mxu0 %v323
        %v702 = vpop.f32.mrf.mxu0
        %v703 = vadd.f32 0.0, %v702
        %v704 = vpop.f32.mrf.mxu0
        %v705 = vadd.f32 0.0, %v704
        %706 = vmatmul.bf16.gmra.mxu0 %v324
        %v707 = vpop.f32.mrf.mxu0
        %v708 = vadd.f32 0.0, %v707
        %v709 = vpop.f32.mrf.mxu0
        %v710 = vadd.f32 0.0, %v709
        %711 = vmatmul.bf16.gmra.mxu0 %v325
        %v712 = vpop.f32.mrf.mxu0
        %v713 = vadd.f32 0.0, %v712
        %v714 = vpop.f32.mrf.mxu0
        %v715 = vadd.f32 0.0, %v714
        %716 = vmatmul.bf16.gmra.mxu0 %v326
        %v717 = vpop.f32.mrf.mxu0
        %v718 = vadd.f32 0.0, %v717
        %v719 = vpop.f32.mrf.mxu0
        %v720 = vadd.f32 0.0, %v719
        %721 = vmatmul.bf16.gmra.mxu0 %v327
        %v722 = vpop.f32.mrf.mxu0
        %v723 = vadd.f32 0.0, %v722
        %v724 = vpop.f32.mrf.mxu0
        %v725 = vadd.f32 0.0, %v724
        %726 = vmatmul.bf16.gmra.mxu0 %v328
        %v727 = vpop.f32.mrf.mxu0
        %v728 = vadd.f32 0.0, %v727
        %v729 = vpop.f32.mrf.mxu0
        %v730 = vadd.f32 0.0, %v729
        %731 = vmatmul.bf16.gmra.mxu0 %v329
        %v732 = vpop.f32.mrf.mxu0
        %v733 = vadd.f32 0.0, %v732
        %v734 = vpop.f32.mrf.mxu0
        %v735 = vadd.f32 0.0, %v734
        %736 = vmatmul.bf16.gmra.mxu0 %v330
        %v737 = vpop.f32.mrf.mxu0
        %v738 = vadd.f32 0.0, %v737
        %v739 = vpop.f32.mrf.mxu0
        %v740 = vadd.f32 0.0, %v739
        %741 = vdwg.mxu0
        %742 = vmatpush.bf16.msra.mxu0 %v659
        %743 = vmatpush.bf16.msra.mxu0 %v657
        %744 = vmatpush.bf16.msra.mxu0 %v655
        %745 = vmatpush.bf16.msra.mxu0 %v653
        %746 = vmatpush.bf16.msra.mxu0 %v651
        %747 = vmatpush.bf16.msra.mxu0 %v649
        %748 = vmatpush.bf16.msra.mxu0 %v647
        %749 = vmatpush.bf16.msra.mxu0 %v645
        %750 = vmatmul.bf16.gmra.mxu0 %v375
        %v751 = vpop.f32.mrf.mxu0
        %v752 = vadd.f32 %v703, %v751
        %v753 = vpop.f32.mrf.mxu0
        %v754 = vadd.f32 %v705, %v753
        %755 = vmatmul.bf16.gmra.mxu0 %v387
        %v756 = vpop.f32.mrf.mxu0
        %v757 = vadd.f32 %v708, %v756
        %v758 = vpop.f32.mrf.mxu0
        %v759 = vadd.f32 %v710, %v758
        %760 = vmatmul.bf16.gmra.mxu0 %v399
        %v761 = vpop.f32.mrf.mxu0
        %v762 = vadd.f32 %v713, %v761
        %v763 = vpop.f32.mrf.mxu0
        %v764 = vadd.f32 %v715, %v763
        %765 = vmatmul.bf16.gmra.mxu0 %v411
        %v766 = vpop.f32.mrf.mxu0
        %v767 = vadd.f32 %v718, %v766
        %v768 = vpop.f32.mrf.mxu0
        %v769 = vadd.f32 %v720, %v768
        %770 = vmatmul.bf16.gmra.mxu0 %v423
        %v771 = vpop.f32.mrf.mxu0
        %v772 = vadd.f32 %v723, %v771
        %v773 = vpop.f32.mrf.mxu0
        %v774 = vadd.f32 %v725, %v773
        %775 = vmatmul.bf16.gmra.mxu0 %v435
        %v776 = vpop.f32.mrf.mxu0
        %v777 = vadd.f32 %v728, %v776
        %v778 = vpop.f32.mrf.mxu0
        %v779 = vadd.f32 %v730, %v778
        %780 = vmatmul.bf16.gmra.mxu0 %v447
        %v781 = vpop.f32.mrf.mxu0
        %v782 = vadd.f32 %v733, %v781
        %v783 = vpop.f32.mrf.mxu0
        %v784 = vadd.f32 %v735, %v783
        %785 = vmatmul.bf16.gmra.mxu0 %v459
        %v786 = vpop.f32.mrf.mxu0
        %v787 = vadd.f32 %v738, %v786
        %v788 = vpop.f32.mrf.mxu0
        %v789 = vadd.f32 %v740, %v788
        %790 = vdwg.mxu0
        %791 = vmatpush.bf16.msra.mxu0 %v644
        %792 = vmatpush.bf16.msra.mxu0 %v642
        %793 = vmatpush.bf16.msra.mxu0 %v640
        %794 = vmatpush.bf16.msra.mxu0 %v638
        %795 = vmatpush.bf16.msra.mxu0 %v636
        %796 = vmatpush.bf16.msra.mxu0 %v634
        %797 = vmatpush.bf16.msra.mxu0 %v632
        %798 = vmatpush.bf16.msra.mxu0 %v630
        %799 = vmatmul.bf16.gmra.mxu0 %v323
        %v800 = vpop.f32.mrf.mxu0
        %v801 = vadd.f32 0.0, %v800
        %v802 = vpop.f32.mrf.mxu0
        %v803 = vadd.f32 0.0, %v802
        %804 = vmatmul.bf16.gmra.mxu0 %v324
        %v805 = vpop.f32.mrf.mxu0
        %v806 = vadd.f32 0.0, %v805
        %v807 = vpop.f32.mrf.mxu0
        %v808 = vadd.f32 0.0, %v807
        %809 = vmatmul.bf16.gmra.mxu0 %v325
        %v810 = vpop.f32.mrf.mxu0
        %v811 = vadd.f32 0.0, %v810
        %v812 = vpop.f32.mrf.mxu0
        %v813 = vadd.f32 0.0, %v812
        %814 = vmatmul.bf16.gmra.mxu0 %v326
        %v815 = vpop.f32.mrf.mxu0
        %v816 = vadd.f32 0.0, %v815
        %v817 = vpop.f32.mrf.mxu0
        %v818 = vadd.f32 0.0, %v817
        %819 = vmatmul.bf16.gmra.mxu0 %v327
        %v820 = vpop.f32.mrf.mxu0
        %v821 = vadd.f32 0.0, %v820
        %v822 = vpop.f32.mrf.mxu0
        %v823 = vadd.f32 0.0, %v822
        %824 = vmatmul.bf16.gmra.mxu0 %v328
        %v825 = vpop.f32.mrf.mxu0
        %v826 = vadd.f32 0.0, %v825
        %v827 = vpop.f32.mrf.mxu0
        %v828 = vadd.f32 0.0, %v827
        %829 = vmatmul.bf16.gmra.mxu0 %v329
        %v830 = vpop.f32.mrf.mxu0
        %v831 = vadd.f32 0.0, %v830
        %v832 = vpop.f32.mrf.mxu0
        %v833 = vadd.f32 0.0, %v832
        %834 = vmatmul.bf16.gmra.mxu0 %v330
        %v835 = vpop.f32.mrf.mxu0
        %v836 = vadd.f32 0.0, %v835
        %v837 = vpop.f32.mrf.mxu0
        %v838 = vadd.f32 0.0, %v837
        %839 = vdwg.mxu0
        %840 = vmatpush.bf16.msra.mxu0 %v660
        %841 = vmatpush.bf16.msra.mxu0 %v658
        %842 = vmatpush.bf16.msra.mxu0 %v656
        %843 = vmatpush.bf16.msra.mxu0 %v654
        %844 = vmatpush.bf16.msra.mxu0 %v652
        %845 = vmatpush.bf16.msra.mxu0 %v650
        %846 = vmatpush.bf16.msra.mxu0 %v648
        %847 = vmatpush.bf16.msra.mxu0 %v646
        %848 = vmatmul.bf16.gmra.mxu0 %v375
        %v849 = vpop.f32.mrf.mxu0
        %v850 = vadd.f32 %v801, %v849
        %v851 = vpop.f32.mrf.mxu0
        %v852 = vadd.f32 %v803, %v851
        %853 = vmatmul.bf16.gmra.mxu0 %v387
        %v854 = vpop.f32.mrf.mxu0
        %v855 = vadd.f32 %v806, %v854
        %v856 = vpop.f32.mrf.mxu0
        %v857 = vadd.f32 %v808, %v856
        %858 = vmatmul.bf16.gmra.mxu0 %v399
        %v859 = vpop.f32.mrf.mxu0
        %v860 = vadd.f32 %v811, %v859
        %v861 = vpop.f32.mrf.mxu0
        %v862 = vadd.f32 %v813, %v861
        %863 = vmatmul.bf16.gmra.mxu0 %v411
        %v864 = vpop.f32.mrf.mxu0
        %v865 = vadd.f32 %v816, %v864
        %v866 = vpop.f32.mrf.mxu0
        %v867 = vadd.f32 %v818, %v866
        %868 = vmatmul.bf16.gmra.mxu0 %v423
        %v869 = vpop.f32.mrf.mxu0
        %v870 = vadd.f32 %v821, %v869
        %v871 = vpop.f32.mrf.mxu0
        %v872 = vadd.f32 %v823, %v871
        %873 = vmatmul.bf16.gmra.mxu0 %v435
        %v874 = vpop.f32.mrf.mxu0
        %v875 = vadd.f32 %v826, %v874
        %v876 = vpop.f32.mrf.mxu0
        %v877 = vadd.f32 %v828, %v876
        %878 = vmatmul.bf16.gmra.mxu0 %v447
        %v879 = vpop.f32.mrf.mxu0
        %v880 = vadd.f32 %v831, %v879
        %v881 = vpop.f32.mrf.mxu0
        %v882 = vadd.f32 %v833, %v881
        %883 = vmatmul.bf16.gmra.mxu0 %v459
        %v884 = vpop.f32.mrf.mxu0
        %v885 = vadd.f32 %v836, %v884
        %v886 = vpop.f32.mrf.mxu0
        %v887 = vadd.f32 %v838, %v886
        %888 = vdwg.mxu0
        %v889 = vrot.slane %v752, 2
        %v890 = vrot.slane %v850, 2
        %v891 = vrot.slane %v757, 2
        %v892 = vrot.slane %v855, 2
        %v893 = vrot.slane %v762, 2
        %v894 = vrot.slane %v860, 2
        %v895 = vrot.slane %v767, 2
        %v896 = vrot.slane %v865, 2
        %v897 = vrot.slane %v772, 2
        %v898 = vrot.slane %v870, 2
        %v899 = vrot.slane %v777, 2
        %v900 = vrot.slane %v875, 2
        %v901 = vrot.slane %v782, 2
        %v902 = vrot.slane %v880, 2
        %v903 = vrot.slane %v787, 2
        %v904 = vrot.slane %v885, 2
        %v905 = vrot.slane %v754, 2
        %v906 = vrot.slane %v852, 2
        %v907 = vrot.slane %v759, 2
        %v908 = vrot.slane %v857, 2
        %v909 = vrot.slane %v764, 2
        %v910 = vrot.slane %v862, 2
        %v911 = vrot.slane %v769, 2
        %v912 = vrot.slane %v867, 2
        %v913 = vrot.slane %v774, 2
        %v914 = vrot.slane %v872, 2
        %v915 = vrot.slane %v779, 2
        %v916 = vrot.slane %v877, 2
        %v917 = vrot.slane %v784, 2
        %v918 = vrot.slane %v882, 2
        %v919 = vrot.slane %v789, 2
        %v920 = vrot.slane %v887, 2
        %v921 = vlaneseq
        %v922 = vshrl.u32 %v921, 7
        %vm923 = vcmp.lt.s32.totalorder %v922, 6
        %v924 = vsel %vm923, %v889, %v905
        %v925 = vsel %vm923, %v890, %v906
        %v926 = vsel %vm923, %v891, %v907
        %v927 = vsel %vm923, %v892, %v908
        %v928 = vsel %vm923, %v893, %v909
        %v929 = vsel %vm923, %v894, %v910
        %v930 = vsel %vm923, %v895, %v911
        %v931 = vsel %vm923, %v896, %v912
        %v932 = vsel %vm923, %v897, %v913
        %v933 = vsel %vm923, %v898, %v914
        %v934 = vsel %vm923, %v899, %v915
        %v935 = vsel %vm923, %v900, %v916
        %v936 = vsel %vm923, %v901, %v917
        %v937 = vsel %vm923, %v902, %v918
        %v938 = vsel %vm923, %v903, %v919
        %v939 = vsel %vm923, %v904, %v920
        %v940 = vsel %vm923, %v905, %v889
        %v941 = vsel %vm923, %v906, %v890
        %v942 = vsel %vm923, %v907, %v891
        %v943 = vsel %vm923, %v908, %v892
        %v944 = vsel %vm923, %v909, %v893
        %v945 = vsel %vm923, %v910, %v894
        %v946 = vsel %vm923, %v911, %v895
        %v947 = vsel %vm923, %v912, %v896
        %v948 = vsel %vm923, %v913, %v897
        %v949 = vsel %vm923, %v914, %v898
        %v950 = vsel %vm923, %v915, %v899
        %v951 = vsel %vm923, %v916, %v900
        %v952 = vsel %vm923, %v917, %v901
        %v953 = vsel %vm923, %v918, %v902
        %v954 = vsel %vm923, %v919, %v903
        %v955 = vsel %vm923, %v920, %v904
        %v988 = vunpack.c.l.b16 %v468
        %v989 = vunpack.c.h.b16 %v468
        %v990 = vunpack.c.l.b16 %v469
        %v991 = vunpack.c.h.b16 %v469
        %v992 = vunpack.c.l.b16 %v470
        %v993 = vunpack.c.h.b16 %v470
        %v994 = vunpack.c.l.b16 %v471
        %v995 = vunpack.c.h.b16 %v471
        %v996 = vunpack.c.l.b16 %v472
        %v997 = vunpack.c.h.b16 %v472
        %v998 = vunpack.c.l.b16 %v473
        %v999 = vunpack.c.h.b16 %v473
        %v1000 = vunpack.c.l.b16 %v474
        %v1001 = vunpack.c.h.b16 %v474
        %v1002 = vunpack.c.l.b16 %v475
        %v1003 = vunpack.c.h.b16 %v475
        %v1004 = vunpack.c.l.b16 %v476
        %v1005 = vunpack.c.h.b16 %v476
        %v1006 = vunpack.c.l.b16 %v477
        %v1007 = vunpack.c.h.b16 %v477
        %v1008 = vunpack.c.l.b16 %v478
        %v1009 = vunpack.c.h.b16 %v478
        %v1010 = vunpack.c.l.b16 %v479
        %v1011 = vunpack.c.h.b16 %v479
        %v1012 = vunpack.c.l.b16 %v480
        %v1013 = vunpack.c.h.b16 %v480
        %v1014 = vunpack.c.l.b16 %v481
        %v1015 = vunpack.c.h.b16 %v481
        %v1016 = vunpack.c.l.b16 %v482
        %v1017 = vunpack.c.h.b16 %v482
        %v1018 = vunpack.c.l.b16 %v483
        %v1019 = vunpack.c.h.b16 %v483
        %v1020 = vunpack.c.l.b16 %v484
        %v1021 = vunpack.c.h.b16 %v484
        %v1022 = vunpack.c.l.b16 %v485
        %v1023 = vunpack.c.h.b16 %v485
        %v1024 = vunpack.c.l.b16 %v486
        %v1025 = vunpack.c.h.b16 %v486
        %v1026 = vunpack.c.l.b16 %v487
        %v1027 = vunpack.c.h.b16 %v487
        %v1028 = vunpack.c.l.b16 %v488
        %v1029 = vunpack.c.h.b16 %v488
        %v1030 = vunpack.c.l.b16 %v489
        %v1031 = vunpack.c.h.b16 %v489
        %v1032 = vunpack.c.l.b16 %v490
        %v1033 = vunpack.c.h.b16 %v490
        %v1034 = vunpack.c.l.b16 %v491
        %v1035 = vunpack.c.h.b16 %v491
        %v1036 = vunpack.c.l.b16 %v492
        %v1037 = vunpack.c.h.b16 %v492
        %v1038 = vunpack.c.l.b16 %v493
        %v1039 = vunpack.c.h.b16 %v493
        %v1040 = vunpack.c.l.b16 %v494
        %v1041 = vunpack.c.h.b16 %v494
        %v1042 = vunpack.c.l.b16 %v495
        %v1043 = vunpack.c.h.b16 %v495
        %v1044 = vunpack.c.l.b16 %v496
        %v1045 = vunpack.c.h.b16 %v496
        %v1046 = vunpack.c.l.b16 %v497
        %v1047 = vunpack.c.h.b16 %v497
        %v1048 = vunpack.c.l.b16 %v498
        %v1049 = vunpack.c.h.b16 %v498
        %v1050 = vunpack.c.l.b16 %v499
        %v1051 = vunpack.c.h.b16 %v499
        %v1052 = vpack.c.b16 %v990, %v988
        %v1053 = vpack.c.b16 %v991, %v989
        %v1054 = vpack.c.b16 %v994, %v992
        %v1055 = vpack.c.b16 %v995, %v993
        %v1056 = vpack.c.b16 %v998, %v996
        %v1057 = vpack.c.b16 %v999, %v997
        %v1058 = vpack.c.b16 %v1002, %v1000
        %v1059 = vpack.c.b16 %v1003, %v1001
        %v1060 = vpack.c.b16 %v1006, %v1004
        %v1061 = vpack.c.b16 %v1007, %v1005
        %v1062 = vpack.c.b16 %v1010, %v1008
        %v1063 = vpack.c.b16 %v1011, %v1009
        %v1064 = vpack.c.b16 %v1014, %v1012
        %v1065 = vpack.c.b16 %v1015, %v1013
        %v1066 = vpack.c.b16 %v1018, %v1016
        %v1067 = vpack.c.b16 %v1019, %v1017
        %v1068 = vpack.c.b16 %v1022, %v1020
        %v1069 = vpack.c.b16 %v1023, %v1021
        %v1070 = vpack.c.b16 %v1026, %v1024
        %v1071 = vpack.c.b16 %v1027, %v1025
        %v1072 = vpack.c.b16 %v1030, %v1028
        %v1073 = vpack.c.b16 %v1031, %v1029
        %v1074 = vpack.c.b16 %v1034, %v1032
        %v1075 = vpack.c.b16 %v1035, %v1033
        %v1076 = vpack.c.b16 %v1038, %v1036
        %v1077 = vpack.c.b16 %v1039, %v1037
        %v1078 = vpack.c.b16 %v1042, %v1040
        %v1079 = vpack.c.b16 %v1043, %v1041
        %v1080 = vpack.c.b16 %v1046, %v1044
        %v1081 = vpack.c.b16 %v1047, %v1045
        %v1082 = vpack.c.b16 %v1050, %v1048
        %v1083 = vpack.c.b16 %v1051, %v1049
        %1116 = vmatpush.bf16.msra.mxu0 %v1066
        %1117 = vmatpush.bf16.msra.mxu0 %v1064
        %1118 = vmatpush.bf16.msra.mxu0 %v1062
        %1119 = vmatpush.bf16.msra.mxu0 %v1060
        %1120 = vmatpush.bf16.msra.mxu0 %v1058
        %1121 = vmatpush.bf16.msra.mxu0 %v1056
        %1122 = vmatpush.bf16.msra.mxu0 %v1054
        %1123 = vmatpush.bf16.msra.mxu0 %v1052
        %1124 = vmatmul.bf16.gmra.mxu0 %v323
        %v1125 = vpop.f32.mrf.mxu0
        %v1126 = vadd.f32 %v924, %v1125
        %v1127 = vpop.f32.mrf.mxu0
        %v1128 = vadd.f32 %v940, %v1127
        %1129 = vmatmul.bf16.gmra.mxu0 %v324
        %v1130 = vpop.f32.mrf.mxu0
        %v1131 = vadd.f32 %v926, %v1130
        %v1132 = vpop.f32.mrf.mxu0
        %v1133 = vadd.f32 %v942, %v1132
        %1134 = vmatmul.bf16.gmra.mxu0 %v325
        %v1135 = vpop.f32.mrf.mxu0
        %v1136 = vadd.f32 %v928, %v1135
        %v1137 = vpop.f32.mrf.mxu0
        %v1138 = vadd.f32 %v944, %v1137
        %1139 = vmatmul.bf16.gmra.mxu0 %v326
        %v1140 = vpop.f32.mrf.mxu0
        %v1141 = vadd.f32 %v930, %v1140
        %v1142 = vpop.f32.mrf.mxu0
        %v1143 = vadd.f32 %v946, %v1142
        %1144 = vmatmul.bf16.gmra.mxu0 %v327
        %v1145 = vpop.f32.mrf.mxu0
        %v1146 = vadd.f32 %v932, %v1145
        %v1147 = vpop.f32.mrf.mxu0
        %v1148 = vadd.f32 %v948, %v1147
        %1149 = vmatmul.bf16.gmra.mxu0 %v328
        %v1150 = vpop.f32.mrf.mxu0
        %v1151 = vadd.f32 %v934, %v1150
        %v1152 = vpop.f32.mrf.mxu0
        %v1153 = vadd.f32 %v950, %v1152
        %1154 = vmatmul.bf16.gmra.mxu0 %v329
        %v1155 = vpop.f32.mrf.mxu0
        %v1156 = vadd.f32 %v936, %v1155
        %v1157 = vpop.f32.mrf.mxu0
        %v1158 = vadd.f32 %v952, %v1157
        %1159 = vmatmul.bf16.gmra.mxu0 %v330
        %v1160 = vpop.f32.mrf.mxu0
        %v1161 = vadd.f32 %v938, %v1160
        %v1162 = vpop.f32.mrf.mxu0
        %v1163 = vadd.f32 %v954, %v1162
        %1164 = vdwg.mxu0
        %1165 = vmatpush.bf16.msra.mxu0 %v1082
        %1166 = vmatpush.bf16.msra.mxu0 %v1080
        %1167 = vmatpush.bf16.msra.mxu0 %v1078
        %1168 = vmatpush.bf16.msra.mxu0 %v1076
        %1169 = vmatpush.bf16.msra.mxu0 %v1074
        %1170 = vmatpush.bf16.msra.mxu0 %v1072
        %1171 = vmatpush.bf16.msra.mxu0 %v1070
        %1172 = vmatpush.bf16.msra.mxu0 %v1068
        %1173 = vmatmul.bf16.gmra.mxu0 %v375
        %v1174 = vpop.f32.mrf.mxu0
        %v1175 = vadd.f32 %v1126, %v1174
        %v1176 = vpop.f32.mrf.mxu0
        %v1177 = vadd.f32 %v1128, %v1176
        %1178 = vmatmul.bf16.gmra.mxu0 %v387
        %v1179 = vpop.f32.mrf.mxu0
        %v1180 = vadd.f32 %v1131, %v1179
        %v1181 = vpop.f32.mrf.mxu0
        %v1182 = vadd.f32 %v1133, %v1181
        %1183 = vmatmul.bf16.gmra.mxu0 %v399
        %v1184 = vpop.f32.mrf.mxu0
        %v1185 = vadd.f32 %v1136, %v1184
        %v1186 = vpop.f32.mrf.mxu0
        %v1187 = vadd.f32 %v1138, %v1186
        %1188 = vmatmul.bf16.gmra.mxu0 %v411
        %v1189 = vpop.f32.mrf.mxu0
        %v1190 = vadd.f32 %v1141, %v1189
        %v1191 = vpop.f32.mrf.mxu0
        %v1192 = vadd.f32 %v1143, %v1191
        %1193 = vmatmul.bf16.gmra.mxu0 %v423
        %v1194 = vpop.f32.mrf.mxu0
        %v1195 = vadd.f32 %v1146, %v1194
        %v1196 = vpop.f32.mrf.mxu0
        %v1197 = vadd.f32 %v1148, %v1196
        %1198 = vmatmul.bf16.gmra.mxu0 %v435
        %v1199 = vpop.f32.mrf.mxu0
        %v1200 = vadd.f32 %v1151, %v1199
        %v1201 = vpop.f32.mrf.mxu0
        %v1202 = vadd.f32 %v1153, %v1201
        %1203 = vmatmul.bf16.gmra.mxu0 %v447
        %v1204 = vpop.f32.mrf.mxu0
        %v1205 = vadd.f32 %v1156, %v1204
        %v1206 = vpop.f32.mrf.mxu0
        %v1207 = vadd.f32 %v1158, %v1206
        %1208 = vmatmul.bf16.gmra.mxu0 %v459
        %v1209 = vpop.f32.mrf.mxu0
        %v1210 = vadd.f32 %v1161, %v1209
        %v1211 = vpop.f32.mrf.mxu0
        %v1212 = vadd.f32 %v1163, %v1211
        %1213 = vdwg.mxu0
        %1214 = vmatpush.bf16.msra.mxu0 %v1067
        %1215 = vmatpush.bf16.msra.mxu0 %v1065
        %1216 = vmatpush.bf16.msra.mxu0 %v1063
        %1217 = vmatpush.bf16.msra.mxu0 %v1061
        %1218 = vmatpush.bf16.msra.mxu0 %v1059
        %1219 = vmatpush.bf16.msra.mxu0 %v1057
        %1220 = vmatpush.bf16.msra.mxu0 %v1055
        %1221 = vmatpush.bf16.msra.mxu0 %v1053
        %1222 = vmatmul.bf16.gmra.mxu0 %v323
        %v1223 = vpop.f32.mrf.mxu0
        %v1224 = vadd.f32 %v925, %v1223
        %v1225 = vpop.f32.mrf.mxu0
        %v1226 = vadd.f32 %v941, %v1225
        %1227 = vmatmul.bf16.gmra.mxu0 %v324
        %v1228 = vpop.f32.mrf.mxu0
        %v1229 = vadd.f32 %v927, %v1228
        %v1230 = vpop.f32.mrf.mxu0
        %v1231 = vadd.f32 %v943, %v1230
        %1232 = vmatmul.bf16.gmra.mxu0 %v325
        %v1233 = vpop.f32.mrf.mxu0
        %v1234 = vadd.f32 %v929, %v1233
        %v1235 = vpop.f32.mrf.mxu0
        %v1236 = vadd.f32 %v945, %v1235
        %1237 = vmatmul.bf16.gmra.mxu0 %v326
        %v1238 = vpop.f32.mrf.mxu0
        %v1239 = vadd.f32 %v931, %v1238
        %v1240 = vpop.f32.mrf.mxu0
        %v1241 = vadd.f32 %v947, %v1240
        %1242 = vmatmul.bf16.gmra.mxu0 %v327
        %v1243 = vpop.f32.mrf.mxu0
        %v1244 = vadd.f32 %v933, %v1243
        %v1245 = vpop.f32.mrf.mxu0
        %v1246 = vadd.f32 %v949, %v1245
        %1247 = vmatmul.bf16.gmra.mxu0 %v328
        %v1248 = vpop.f32.mrf.mxu0
        %v1249 = vadd.f32 %v935, %v1248
        %v1250 = vpop.f32.mrf.mxu0
        %v1251 = vadd.f32 %v951, %v1250
        %1252 = vmatmul.bf16.gmra.mxu0 %v329
        %v1253 = vpop.f32.mrf.mxu0
        %v1254 = vadd.f32 %v937, %v1253
        %v1255 = vpop.f32.mrf.mxu0
        %v1256 = vadd.f32 %v953, %v1255
        %1257 = vmatmul.bf16.gmra.mxu0 %v330
        %v1258 = vpop.f32.mrf.mxu0
        %v1259 = vadd.f32 %v939, %v1258
        %v1260 = vpop.f32.mrf.mxu0
        %v1261 = vadd.f32 %v955, %v1260
        %1262 = vdwg.mxu0
        %1263 = vmatpush.bf16.msra.mxu0 %v1083
        %1264 = vmatpush.bf16.msra.mxu0 %v1081
        %1265 = vmatpush.bf16.msra.mxu0 %v1079
        %1266 = vmatpush.bf16.msra.mxu0 %v1077
        %1267 = vmatpush.bf16.msra.mxu0 %v1075
        %1268 = vmatpush.bf16.msra.mxu0 %v1073
        %1269 = vmatpush.bf16.msra.mxu0 %v1071
        %1270 = vmatpush.bf16.msra.mxu0 %v1069
        %1271 = vmatmul.bf16.gmra.mxu0 %v375
        %v1272 = vpop.f32.mrf.mxu0
        %v1273 = vadd.f32 %v1224, %v1272
        %v1274 = vpop.f32.mrf.mxu0
        %v1275 = vadd.f32 %v1226, %v1274
        %1276 = vmatmul.bf16.gmra.mxu0 %v387
        %v1277 = vpop.f32.mrf.mxu0
        %v1278 = vadd.f32 %v1229, %v1277
        %v1279 = vpop.f32.mrf.mxu0
        %v1280 = vadd.f32 %v1231, %v1279
        %1281 = vmatmul.bf16.gmra.mxu0 %v399
        %v1282 = vpop.f32.mrf.mxu0
        %v1283 = vadd.f32 %v1234, %v1282
        %v1284 = vpop.f32.mrf.mxu0
        %v1285 = vadd.f32 %v1236, %v1284
        %1286 = vmatmul.bf16.gmra.mxu0 %v411
        %v1287 = vpop.f32.mrf.mxu0
        %v1288 = vadd.f32 %v1239, %v1287
        %v1289 = vpop.f32.mrf.mxu0
        %v1290 = vadd.f32 %v1241, %v1289
        %1291 = vmatmul.bf16.gmra.mxu0 %v423
        %v1292 = vpop.f32.mrf.mxu0
        %v1293 = vadd.f32 %v1244, %v1292
        %v1294 = vpop.f32.mrf.mxu0
        %v1295 = vadd.f32 %v1246, %v1294
        %1296 = vmatmul.bf16.gmra.mxu0 %v435
        %v1297 = vpop.f32.mrf.mxu0
        %v1298 = vadd.f32 %v1249, %v1297
        %v1299 = vpop.f32.mrf.mxu0
        %v1300 = vadd.f32 %v1251, %v1299
        %1301 = vmatmul.bf16.gmra.mxu0 %v447
        %v1302 = vpop.f32.mrf.mxu0
        %v1303 = vadd.f32 %v1254, %v1302
        %v1304 = vpop.f32.mrf.mxu0
        %v1305 = vadd.f32 %v1256, %v1304
        %1306 = vmatmul.bf16.gmra.mxu0 %v459
        %v1307 = vpop.f32.mrf.mxu0
        %v1308 = vadd.f32 %v1259, %v1307
        %v1309 = vpop.f32.mrf.mxu0
        %v1310 = vadd.f32 %v1261, %v1309
        %1311 = vdwg.mxu0
        %s1312 = scalar_lea.vmem %s1, 512
        %v1313 = vld [vmem:[%s1312] sm:$0xff]
        %v1314 = vld [vmem:[%s1312 + $0x8] sm:$0xff]
        %v1315 = vld [vmem:[%s1312 + $0x10] sm:$0xff]
        %v1316 = vld [vmem:[%s1312 + $0x18] sm:$0xff]
        %v1317 = vld [vmem:[%s1312 + $0x20] sm:$0xff]
        %v1318 = vld [vmem:[%s1312 + $0x28] sm:$0xff]
        %v1319 = vld [vmem:[%s1312 + $0x30] sm:$0xff]
        %v1320 = vld [vmem:[%s1312 + $0x38] sm:$0xff]
        %v1321 = vld [vmem:[%s1312 + $0x40] sm:$0xff]
        %v1322 = vld [vmem:[%s1312 + $0x48] sm:$0xff]
        %v1323 = vld [vmem:[%s1312 + $0x50] sm:$0xff]
        %v1324 = vld [vmem:[%s1312 + $0x58] sm:$0xff]
        %v1325 = vld [vmem:[%s1312 + $0x60] sm:$0xff]
        %v1326 = vld [vmem:[%s1312 + $0x68] sm:$0xff]
        %v1327 = vld [vmem:[%s1312 + $0x70] sm:$0xff]
        %v1328 = vld [vmem:[%s1312 + $0x78] sm:$0xff]
        %v1329 = vld [vmem:[%s1312 + $0x80] sm:$0xff]
        %v1330 = vld [vmem:[%s1312 + $0x88] sm:$0xff]
        %v1331 = vld [vmem:[%s1312 + $0x90] sm:$0xff]
        %v1332 = vld [vmem:[%s1312 + $0x98] sm:$0xff]
        %v1333 = vld [vmem:[%s1312 + $0xa0] sm:$0xff]
        %v1334 = vld [vmem:[%s1312 + $0xa8] sm:$0xff]
        %v1335 = vld [vmem:[%s1312 + $0xb0] sm:$0xff]
        %v1336 = vld [vmem:[%s1312 + $0xb8] sm:$0xff]
        %v1337 = vld [vmem:[%s1312 + $0xc0] sm:$0xff]
        %v1338 = vld [vmem:[%s1312 + $0xc8] sm:$0xff]
        %v1339 = vld [vmem:[%s1312 + $0xd0] sm:$0xff]
        %v1340 = vld [vmem:[%s1312 + $0xd8] sm:$0xff]
        %v1341 = vld [vmem:[%s1312 + $0xe0] sm:$0xff]
        %v1342 = vld [vmem:[%s1312 + $0xe8] sm:$0xff]
        %v1343 = vld [vmem:[%s1312 + $0xf0] sm:$0xff]
        %v1344 = vld [vmem:[%s1312 + $0xf8] sm:$0xff]
        %v1377 = vunpack.c.l.b16 %v1313
        %v1378 = vunpack.c.h.b16 %v1313
        %v1379 = vunpack.c.l.b16 %v1314
        %v1380 = vunpack.c.h.b16 %v1314
        %v1381 = vunpack.c.l.b16 %v1315
        %v1382 = vunpack.c.h.b16 %v1315
        %v1383 = vunpack.c.l.b16 %v1316
        %v1384 = vunpack.c.h.b16 %v1316
        %v1385 = vunpack.c.l.b16 %v1317
        %v1386 = vunpack.c.h.b16 %v1317
        %v1387 = vunpack.c.l.b16 %v1318
        %v1388 = vunpack.c.h.b16 %v1318
        %v1389 = vunpack.c.l.b16 %v1319
        %v1390 = vunpack.c.h.b16 %v1319
        %v1391 = vunpack.c.l.b16 %v1320
        %v1392 = vunpack.c.h.b16 %v1320
        %v1393 = vunpack.c.l.b16 %v1321
        %v1394 = vunpack.c.h.b16 %v1321
        %v1395 = vunpack.c.l.b16 %v1322
        %v1396 = vunpack.c.h.b16 %v1322
        %v1397 = vunpack.c.l.b16 %v1323
        %v1398 = vunpack.c.h.b16 %v1323
        %v1399 = vunpack.c.l.b16 %v1324
        %v1400 = vunpack.c.h.b16 %v1324
        %v1401 = vunpack.c.l.b16 %v1325
        %v1402 = vunpack.c.h.b16 %v1325
        %v1403 = vunpack.c.l.b16 %v1326
        %v1404 = vunpack.c.h.b16 %v1326
        %v1405 = vunpack.c.l.b16 %v1327
        %v1406 = vunpack.c.h.b16 %v1327
        %v1407 = vunpack.c.l.b16 %v1328
        %v1408 = vunpack.c.h.b16 %v1328
        %v1409 = vunpack.c.l.b16 %v1329
        %v1410 = vunpack.c.h.b16 %v1329
        %v1411 = vunpack.c.l.b16 %v1330
        %v1412 = vunpack.c.h.b16 %v1330
        %v1413 = vunpack.c.l.b16 %v1331
        %v1414 = vunpack.c.h.b16 %v1331
        %v1415 = vunpack.c.l.b16 %v1332
        %v1416 = vunpack.c.h.b16 %v1332
        %v1417 = vunpack.c.l.b16 %v1333
        %v1418 = vunpack.c.h.b16 %v1333
        %v1419 = vunpack.c.l.b16 %v1334
        %v1420 = vunpack.c.h.b16 %v1334
        %v1421 = vunpack.c.l.b16 %v1335
        %v1422 = vunpack.c.h.b16 %v1335
        %v1423 = vunpack.c.l.b16 %v1336
        %v1424 = vunpack.c.h.b16 %v1336
        %v1425 = vunpack.c.l.b16 %v1337
        %v1426 = vunpack.c.h.b16 %v1337
        %v1427 = vunpack.c.l.b16 %v1338
        %v1428 = vunpack.c.h.b16 %v1338
        %v1429 = vunpack.c.l.b16 %v1339
        %v1430 = vunpack.c.h.b16 %v1339
        %v1431 = vunpack.c.l.b16 %v1340
        %v1432 = vunpack.c.h.b16 %v1340
        %v1433 = vunpack.c.l.b16 %v1341
        %v1434 = vunpack.c.h.b16 %v1341
        %v1435 = vunpack.c.l.b16 %v1342
        %v1436 = vunpack.c.h.b16 %v1342
        %v1437 = vunpack.c.l.b16 %v1343
        %v1438 = vunpack.c.h.b16 %v1343
        %v1439 = vunpack.c.l.b16 %v1344
        %v1440 = vunpack.c.h.b16 %v1344
        %v1441 = vpack.c.b16 %v1379, %v1377
        %v1442 = vpack.c.b16 %v1380, %v1378
        %v1443 = vpack.c.b16 %v1383, %v1381
        %v1444 = vpack.c.b16 %v1384, %v1382
        %v1445 = vpack.c.b16 %v1387, %v1385
        %v1446 = vpack.c.b16 %v1388, %v1386
        %v1447 = vpack.c.b16 %v1391, %v1389
        %v1448 = vpack.c.b16 %v1392, %v1390
        %v1449 = vpack.c.b16 %v1395, %v1393
        %v1450 = vpack.c.b16 %v1396, %v1394
        %v1451 = vpack.c.b16 %v1399, %v1397
        %v1452 = vpack.c.b16 %v1400, %v1398
        %v1453 = vpack.c.b16 %v1403, %v1401
        %v1454 = vpack.c.b16 %v1404, %v1402
        %v1455 = vpack.c.b16 %v1407, %v1405
        %v1456 = vpack.c.b16 %v1408, %v1406
        %v1457 = vpack.c.b16 %v1411, %v1409
        %v1458 = vpack.c.b16 %v1412, %v1410
        %v1459 = vpack.c.b16 %v1415, %v1413
        %v1460 = vpack.c.b16 %v1416, %v1414
        %v1461 = vpack.c.b16 %v1419, %v1417
        %v1462 = vpack.c.b16 %v1420, %v1418
        %v1463 = vpack.c.b16 %v1423, %v1421
        %v1464 = vpack.c.b16 %v1424, %v1422
        %v1465 = vpack.c.b16 %v1427, %v1425
        %v1466 = vpack.c.b16 %v1428, %v1426
        %v1467 = vpack.c.b16 %v1431, %v1429
        %v1468 = vpack.c.b16 %v1432, %v1430
        %v1469 = vpack.c.b16 %v1435, %v1433
        %v1470 = vpack.c.b16 %v1436, %v1434
        %v1471 = vpack.c.b16 %v1439, %v1437
        %v1472 = vpack.c.b16 %v1440, %v1438
        %1505 = vmatpush.bf16.msra.mxu0 %v1455
        %1506 = vmatpush.bf16.msra.mxu0 %v1453
        %1507 = vmatpush.bf16.msra.mxu0 %v1451
        %1508 = vmatpush.bf16.msra.mxu0 %v1449
        %1509 = vmatpush.bf16.msra.mxu0 %v1447
        %1510 = vmatpush.bf16.msra.mxu0 %v1445
        %1511 = vmatpush.bf16.msra.mxu0 %v1443
        %1512 = vmatpush.bf16.msra.mxu0 %v1441
        %1513 = vmatmul.bf16.gmra.mxu0 %v323
        %v1514 = vpop.f32.mrf.mxu0
        %v1515 = vadd.f32 0.0, %v1514
        %v1516 = vpop.f32.mrf.mxu0
        %v1517 = vadd.f32 0.0, %v1516
        %1518 = vmatmul.bf16.gmra.mxu0 %v324
        %v1519 = vpop.f32.mrf.mxu0
        %v1520 = vadd.f32 0.0, %v1519
        %v1521 = vpop.f32.mrf.mxu0
        %v1522 = vadd.f32 0.0, %v1521
        %1523 = vmatmul.bf16.gmra.mxu0 %v325
        %v1524 = vpop.f32.mrf.mxu0
        %v1525 = vadd.f32 0.0, %v1524
        %v1526 = vpop.f32.mrf.mxu0
        %v1527 = vadd.f32 0.0, %v1526
        %1528 = vmatmul.bf16.gmra.mxu0 %v326
        %v1529 = vpop.f32.mrf.mxu0
        %v1530 = vadd.f32 0.0, %v1529
        %v1531 = vpop.f32.mrf.mxu0
        %v1532 = vadd.f32 0.0, %v1531
        %1533 = vmatmul.bf16.gmra.mxu0 %v327
        %v1534 = vpop.f32.mrf.mxu0
        %v1535 = vadd.f32 0.0, %v1534
        %v1536 = vpop.f32.mrf.mxu0
        %v1537 = vadd.f32 0.0, %v1536
        %1538 = vmatmul.bf16.gmra.mxu0 %v328
        %v1539 = vpop.f32.mrf.mxu0
        %v1540 = vadd.f32 0.0, %v1539
        %v1541 = vpop.f32.mrf.mxu0
        %v1542 = vadd.f32 0.0, %v1541
        %1543 = vmatmul.bf16.gmra.mxu0 %v329
        %v1544 = vpop.f32.mrf.mxu0
        %v1545 = vadd.f32 0.0, %v1544
        %v1546 = vpop.f32.mrf.mxu0
        %v1547 = vadd.f32 0.0, %v1546
        %1548 = vmatmul.bf16.gmra.mxu0 %v330
        %v1549 = vpop.f32.mrf.mxu0
        %v1550 = vadd.f32 0.0, %v1549
        %v1551 = vpop.f32.mrf.mxu0
        %v1552 = vadd.f32 0.0, %v1551
        %1553 = vdwg.mxu0
        %1554 = vmatpush.bf16.msra.mxu0 %v1471
        %1555 = vmatpush.bf16.msra.mxu0 %v1469
        %1556 = vmatpush.bf16.msra.mxu0 %v1467
        %1557 = vmatpush.bf16.msra.mxu0 %v1465
        %1558 = vmatpush.bf16.msra.mxu0 %v1463
        %1559 = vmatpush.bf16.msra.mxu0 %v1461
        %1560 = vmatpush.bf16.msra.mxu0 %v1459
        %1561 = vmatpush.bf16.msra.mxu0 %v1457
        %1562 = vmatmul.bf16.gmra.mxu0 %v375
        %v1563 = vpop.f32.mrf.mxu0
        %v1564 = vadd.f32 %v1515, %v1563
        %v1565 = vpop.f32.mrf.mxu0
        %v1566 = vadd.f32 %v1517, %v1565
        %1567 = vmatmul.bf16.gmra.mxu0 %v387
        %v1568 = vpop.f32.mrf.mxu0
        %v1569 = vadd.f32 %v1520, %v1568
        %v1570 = vpop.f32.mrf.mxu0
        %v1571 = vadd.f32 %v1522, %v1570
        %1572 = vmatmul.bf16.gmra.mxu0 %v399
        %v1573 = vpop.f32.mrf.mxu0
        %v1574 = vadd.f32 %v1525, %v1573
        %v1575 = vpop.f32.mrf.mxu0
        %v1576 = vadd.f32 %v1527, %v1575
        %1577 = vmatmul.bf16.gmra.mxu0 %v411
        %v1578 = vpop.f32.mrf.mxu0
        %v1579 = vadd.f32 %v1530, %v1578
        %v1580 = vpop.f32.mrf.mxu0
        %v1581 = vadd.f32 %v1532, %v1580
        %1582 = vmatmul.bf16.gmra.mxu0 %v423
        %v1583 = vpop.f32.mrf.mxu0
        %v1584 = vadd.f32 %v1535, %v1583
        %v1585 = vpop.f32.mrf.mxu0
        %v1586 = vadd.f32 %v1537, %v1585
        %1587 = vmatmul.bf16.gmra.mxu0 %v435
        %v1588 = vpop.f32.mrf.mxu0
        %v1589 = vadd.f32 %v1540, %v1588
        %v1590 = vpop.f32.mrf.mxu0
        %v1591 = vadd.f32 %v1542, %v1590
        %1592 = vmatmul.bf16.gmra.mxu0 %v447
        %v1593 = vpop.f32.mrf.mxu0
        %v1594 = vadd.f32 %v1545, %v1593
        %v1595 = vpop.f32.mrf.mxu0
        %v1596 = vadd.f32 %v1547, %v1595
        %1597 = vmatmul.bf16.gmra.mxu0 %v459
        %v1598 = vpop.f32.mrf.mxu0
        %v1599 = vadd.f32 %v1550, %v1598
        %v1600 = vpop.f32.mrf.mxu0
        %v1601 = vadd.f32 %v1552, %v1600
        %1602 = vdwg.mxu0
        %1603 = vmatpush.bf16.msra.mxu0 %v1456
        %1604 = vmatpush.bf16.msra.mxu0 %v1454
        %1605 = vmatpush.bf16.msra.mxu0 %v1452
        %1606 = vmatpush.bf16.msra.mxu0 %v1450
        %1607 = vmatpush.bf16.msra.mxu0 %v1448
        %1608 = vmatpush.bf16.msra.mxu0 %v1446
        %1609 = vmatpush.bf16.msra.mxu0 %v1444
        %1610 = vmatpush.bf16.msra.mxu0 %v1442
        %1611 = vmatmul.bf16.gmra.mxu0 %v323
        %v1612 = vpop.f32.mrf.mxu0
        %v1613 = vadd.f32 0.0, %v1612
        %v1614 = vpop.f32.mrf.mxu0
        %v1615 = vadd.f32 0.0, %v1614
        %1616 = vmatmul.bf16.gmra.mxu0 %v324
        %v1617 = vpop.f32.mrf.mxu0
        %v1618 = vadd.f32 0.0, %v1617
        %v1619 = vpop.f32.mrf.mxu0
        %v1620 = vadd.f32 0.0, %v1619
        %1621 = vmatmul.bf16.gmra.mxu0 %v325
        %v1622 = vpop.f32.mrf.mxu0
        %v1623 = vadd.f32 0.0, %v1622
        %v1624 = vpop.f32.mrf.mxu0
        %v1625 = vadd.f32 0.0, %v1624
        %1626 = vmatmul.bf16.gmra.mxu0 %v326
        %v1627 = vpop.f32.mrf.mxu0
        %v1628 = vadd.f32 0.0, %v1627
        %v1629 = vpop.f32.mrf.mxu0
        %v1630 = vadd.f32 0.0, %v1629
        %1631 = vmatmul.bf16.gmra.mxu0 %v327
        %v1632 = vpop.f32.mrf.mxu0
        %v1633 = vadd.f32 0.0, %v1632
        %v1634 = vpop.f32.mrf.mxu0
        %v1635 = vadd.f32 0.0, %v1634
        %1636 = vmatmul.bf16.gmra.mxu0 %v328
        %v1637 = vpop.f32.mrf.mxu0
        %v1638 = vadd.f32 0.0, %v1637
        %v1639 = vpop.f32.mrf.mxu0
        %v1640 = vadd.f32 0.0, %v1639
        %1641 = vmatmul.bf16.gmra.mxu0 %v329
        %v1642 = vpop.f32.mrf.mxu0
        %v1643 = vadd.f32 0.0, %v1642
        %v1644 = vpop.f32.mrf.mxu0
        %v1645 = vadd.f32 0.0, %v1644
        %1646 = vmatmul.bf16.gmra.mxu0 %v330
        %v1647 = vpop.f32.mrf.mxu0
        %v1648 = vadd.f32 0.0, %v1647
        %v1649 = vpop.f32.mrf.mxu0
        %v1650 = vadd.f32 0.0, %v1649
        %1651 = vdwg.mxu0
        %1652 = vmatpush.bf16.msra.mxu0 %v1472
        %1653 = vmatpush.bf16.msra.mxu0 %v1470
        %1654 = vmatpush.bf16.msra.mxu0 %v1468
        %1655 = vmatpush.bf16.msra.mxu0 %v1466
        %1656 = vmatpush.bf16.msra.mxu0 %v1464
        %1657 = vmatpush.bf16.msra.mxu0 %v1462
        %1658 = vmatpush.bf16.msra.mxu0 %v1460
        %1659 = vmatpush.bf16.msra.mxu0 %v1458
        %1660 = vmatmul.bf16.gmra.mxu0 %v375
        %v1661 = vpop.f32.mrf.mxu0
        %v1662 = vadd.f32 %v1613, %v1661
        %v1663 = vpop.f32.mrf.mxu0
        %v1664 = vadd.f32 %v1615, %v1663
        %1665 = vmatmul.bf16.gmra.mxu0 %v387
        %v1666 = vpop.f32.mrf.mxu0
        %v1667 = vadd.f32 %v1618, %v1666
        %v1668 = vpop.f32.mrf.mxu0
        %v1669 = vadd.f32 %v1620, %v1668
        %1670 = vmatmul.bf16.gmra.mxu0 %v399
        %v1671 = vpop.f32.mrf.mxu0
        %v1672 = vadd.f32 %v1623, %v1671
        %v1673 = vpop.f32.mrf.mxu0
        %v1674 = vadd.f32 %v1625, %v1673
        %1675 = vmatmul.bf16.gmra.mxu0 %v411
        %v1676 = vpop.f32.mrf.mxu0
        %v1677 = vadd.f32 %v1628, %v1676
        %v1678 = vpop.f32.mrf.mxu0
        %v1679 = vadd.f32 %v1630, %v1678
        %1680 = vmatmul.bf16.gmra.mxu0 %v423
        %v1681 = vpop.f32.mrf.mxu0
        %v1682 = vadd.f32 %v1633, %v1681
        %v1683 = vpop.f32.mrf.mxu0
        %v1684 = vadd.f32 %v1635, %v1683
        %1685 = vmatmul.bf16.gmra.mxu0 %v435
        %v1686 = vpop.f32.mrf.mxu0
        %v1687 = vadd.f32 %v1638, %v1686
        %v1688 = vpop.f32.mrf.mxu0
        %v1689 = vadd.f32 %v1640, %v1688
        %1690 = vmatmul.bf16.gmra.mxu0 %v447
        %v1691 = vpop.f32.mrf.mxu0
        %v1692 = vadd.f32 %v1643, %v1691
        %v1693 = vpop.f32.mrf.mxu0
        %v1694 = vadd.f32 %v1645, %v1693
        %1695 = vmatmul.bf16.gmra.mxu0 %v459
        %v1696 = vpop.f32.mrf.mxu0
        %v1697 = vadd.f32 %v1648, %v1696
        %v1698 = vpop.f32.mrf.mxu0
        %v1699 = vadd.f32 %v1650, %v1698
        %1700 = vdwg.mxu0
        %v1701 = vrot.slane %v1564, 4
        %v1702 = vrot.slane %v1662, 4
        %v1703 = vrot.slane %v1569, 4
        %v1704 = vrot.slane %v1667, 4
        %v1705 = vrot.slane %v1574, 4
        %v1706 = vrot.slane %v1672, 4
        %v1707 = vrot.slane %v1579, 4
        %v1708 = vrot.slane %v1677, 4
        %v1709 = vrot.slane %v1584, 4
        %v1710 = vrot.slane %v1682, 4
        %v1711 = vrot.slane %v1589, 4
        %v1712 = vrot.slane %v1687, 4
        %v1713 = vrot.slane %v1594, 4
        %v1714 = vrot.slane %v1692, 4
        %v1715 = vrot.slane %v1599, 4
        %v1716 = vrot.slane %v1697, 4
        %v1717 = vrot.slane %v1566, 4
        %v1718 = vrot.slane %v1664, 4
        %v1719 = vrot.slane %v1571, 4
        %v1720 = vrot.slane %v1669, 4
        %v1721 = vrot.slane %v1576, 4
        %v1722 = vrot.slane %v1674, 4
        %v1723 = vrot.slane %v1581, 4
        %v1724 = vrot.slane %v1679, 4
        %v1725 = vrot.slane %v1586, 4
        %v1726 = vrot.slane %v1684, 4
        %v1727 = vrot.slane %v1591, 4
        %v1728 = vrot.slane %v1689, 4
        %v1729 = vrot.slane %v1596, 4
        %v1730 = vrot.slane %v1694, 4
        %v1731 = vrot.slane %v1601, 4
        %v1732 = vrot.slane %v1699, 4
        %vm1733 = vcmp.lt.s32.totalorder %v922, 4
        %v1734 = vsel %vm1733, %v1701, %v1717
        %v1735 = vsel %vm1733, %v1702, %v1718
        %v1736 = vsel %vm1733, %v1703, %v1719
        %v1737 = vsel %vm1733, %v1704, %v1720
        %v1738 = vsel %vm1733, %v1705, %v1721
        %v1739 = vsel %vm1733, %v1706, %v1722
        %v1740 = vsel %vm1733, %v1707, %v1723
        %v1741 = vsel %vm1733, %v1708, %v1724
        %v1742 = vsel %vm1733, %v1709, %v1725
        %v1743 = vsel %vm1733, %v1710, %v1726
        %v1744 = vsel %vm1733, %v1711, %v1727
        %v1745 = vsel %vm1733, %v1712, %v1728
        %v1746 = vsel %vm1733, %v1713, %v1729
        %v1747 = vsel %vm1733, %v1714, %v1730
        %v1748 = vsel %vm1733, %v1715, %v1731
        %v1749 = vsel %vm1733, %v1716, %v1732
        %v1750 = vsel %vm1733, %v1717, %v1701
        %v1751 = vsel %vm1733, %v1718, %v1702
        %v1752 = vsel %vm1733, %v1719, %v1703
        %v1753 = vsel %vm1733, %v1720, %v1704
        %v1754 = vsel %vm1733, %v1721, %v1705
        %v1755 = vsel %vm1733, %v1722, %v1706
        %v1756 = vsel %vm1733, %v1723, %v1707
        %v1757 = vsel %vm1733, %v1724, %v1708
        %v1758 = vsel %vm1733, %v1725, %v1709
        %v1759 = vsel %vm1733, %v1726, %v1710
        %v1760 = vsel %vm1733, %v1727, %v1711
        %v1761 = vsel %vm1733, %v1728, %v1712
        %v1762 = vsel %vm1733, %v1729, %v1713
        %v1763 = vsel %vm1733, %v1730, %v1714
        %v1764 = vsel %vm1733, %v1731, %v1715
        %v1765 = vsel %vm1733, %v1732, %v1716
        %v1766 = vadd.f32 %v1175, %v1734
        %v1767 = vadd.f32 %v1273, %v1735
        %v1768 = vadd.f32 %v1177, %v1750
        %v1769 = vadd.f32 %v1275, %v1751
        %v1770 = vadd.f32 %v1180, %v1736
        %v1771 = vadd.f32 %v1278, %v1737
        %v1772 = vadd.f32 %v1182, %v1752
        %v1773 = vadd.f32 %v1280, %v1753
        %v1774 = vadd.f32 %v1185, %v1738
        %v1775 = vadd.f32 %v1283, %v1739
        %v1776 = vadd.f32 %v1187, %v1754
        %v1777 = vadd.f32 %v1285, %v1755
        %v1778 = vadd.f32 %v1190, %v1740
        %v1779 = vadd.f32 %v1288, %v1741
        %v1780 = vadd.f32 %v1192, %v1756
        %v1781 = vadd.f32 %v1290, %v1757
        %v1782 = vadd.f32 %v1195, %v1742
        %v1783 = vadd.f32 %v1293, %v1743
        %v1784 = vadd.f32 %v1197, %v1758
        %v1785 = vadd.f32 %v1295, %v1759
        %v1786 = vadd.f32 %v1200, %v1744
        %v1787 = vadd.f32 %v1298, %v1745
        %v1788 = vadd.f32 %v1202, %v1760
        %v1789 = vadd.f32 %v1300, %v1761
        %v1790 = vadd.f32 %v1205, %v1746
        %v1791 = vadd.f32 %v1303, %v1747
        %v1792 = vadd.f32 %v1207, %v1762
        %v1793 = vadd.f32 %v1305, %v1763
        %v1794 = vadd.f32 %v1210, %v1748
        %v1795 = vadd.f32 %v1308, %v1749
        %v1796 = vadd.f32 %v1212, %v1764
        %v1797 = vadd.f32 %v1310, %v1765
        %v1798 = vld [vmem:[%s3] sm:$0xff]
        %v1799 = vld [vmem:[%s3 + $0x8] sm:$0xff]
        %v1800 = vld [vmem:[%s3 + $0x10] sm:$0xff]
        %v1801 = vld [vmem:[%s3 + $0x18] sm:$0xff]
        %v1802 = vadd.f32 %v1766, %v1798
        %v1803 = vadd.f32 %v1767, %v1799
        %v1804 = vadd.f32 %v1768, %v1800
        %v1805 = vadd.f32 %v1769, %v1801
        %v1806 = vadd.f32 %v1770, %v1798
        %v1807 = vadd.f32 %v1771, %v1799
        %v1808 = vadd.f32 %v1772, %v1800
        %v1809 = vadd.f32 %v1773, %v1801
        %v1810 = vadd.f32 %v1774, %v1798
        %v1811 = vadd.f32 %v1775, %v1799
        %v1812 = vadd.f32 %v1776, %v1800
        %v1813 = vadd.f32 %v1777, %v1801
        %v1814 = vadd.f32 %v1778, %v1798
        %v1815 = vadd.f32 %v1779, %v1799
        %v1816 = vadd.f32 %v1780, %v1800
        %v1817 = vadd.f32 %v1781, %v1801
        %v1818 = vadd.f32 %v1782, %v1798
        %v1819 = vadd.f32 %v1783, %v1799
        %v1820 = vadd.f32 %v1784, %v1800
        %v1821 = vadd.f32 %v1785, %v1801
        %v1822 = vadd.f32 %v1786, %v1798
        %v1823 = vadd.f32 %v1787, %v1799
        %v1824 = vadd.f32 %v1788, %v1800
        %v1825 = vadd.f32 %v1789, %v1801
        %v1826 = vadd.f32 %v1790, %v1798
        %v1827 = vadd.f32 %v1791, %v1799
        %v1828 = vadd.f32 %v1792, %v1800
        %v1829 = vadd.f32 %v1793, %v1801
        %v1830 = vadd.f32 %v1794, %v1798
        %v1831 = vadd.f32 %v1795, %v1799
        %v1832 = vadd.f32 %v1796, %v1800
        %v1833 = vadd.f32 %v1797, %v1801
        %v1834 = vmax.f32 %v1802, %v1804
        %v1835 = vrot.slane %v1834, 4
        %v1836 = vmax.f32 %v1834, %v1835
        %v1837 = vrot.slane %v1836, 2
        %v1838 = vmax.f32 %v1836, %v1837
        %v1839 = vrot.slane %v1838, 1
        %v1840 = vmax.f32 %v1838, %v1839
        %vm1841 = vcmask 179200
        %v1842 = vsel %vm1841, %v1803, -inf
        %v1843 = vsel %vm1841, %v1805, -inf
        %v1844 = vmax.f32 %v1842, %v1843
        %v1845 = vrot.slane %v1844, 4
        %v1846 = vmax.f32 %v1844, %v1845
        %v1847 = vrot.slane %v1846, 2
        %v1848 = vmax.f32 %v1846, %v1847
        %v1849 = vrot.slane %v1848, 1
        %v1850 = vmax.f32 %v1848, %v1849
        %v1851 = vmax.f32 %v1806, %v1808
        %v1852 = vrot.slane %v1851, 4
        %v1853 = vmax.f32 %v1851, %v1852
        %v1854 = vrot.slane %v1853, 2
        %v1855 = vmax.f32 %v1853, %v1854
        %v1856 = vrot.slane %v1855, 1
        %v1857 = vmax.f32 %v1855, %v1856
        %v1858 = vsel %vm1841, %v1807, -inf
        %v1859 = vsel %vm1841, %v1809, -inf
        %v1860 = vmax.f32 %v1858, %v1859
        %v1861 = vrot.slane %v1860, 4
        %v1862 = vmax.f32 %v1860, %v1861
        %v1863 = vrot.slane %v1862, 2
        %v1864 = vmax.f32 %v1862, %v1863
        %v1865 = vrot.slane %v1864, 1
        %v1866 = vmax.f32 %v1864, %v1865
        %v1867 = vmax.f32 %v1810, %v1812
        %v1868 = vrot.slane %v1867, 4
        %v1869 = vmax.f32 %v1867, %v1868
        %v1870 = vrot.slane %v1869, 2
        %v1871 = vmax.f32 %v1869, %v1870
        %v1872 = vrot.slane %v1871, 1
        %v1873 = vmax.f32 %v1871, %v1872
        %v1874 = vsel %vm1841, %v1811, -inf
        %v1875 = vsel %vm1841, %v1813, -inf
        %v1876 = vmax.f32 %v1874, %v1875
        %v1877 = vrot.slane %v1876, 4
        %v1878 = vmax.f32 %v1876, %v1877
        %v1879 = vrot.slane %v1878, 2
        %v1880 = vmax.f32 %v1878, %v1879
        %v1881 = vrot.slane %v1880, 1
        %v1882 = vmax.f32 %v1880, %v1881
        %v1883 = vmax.f32 %v1814, %v1816
        %v1884 = vrot.slane %v1883, 4
        %v1885 = vmax.f32 %v1883, %v1884
        %v1886 = vrot.slane %v1885, 2
        %v1887 = vmax.f32 %v1885, %v1886
        %v1888 = vrot.slane %v1887, 1
        %v1889 = vmax.f32 %v1887, %v1888
        %v1890 = vsel %vm1841, %v1815, -inf
        %v1891 = vsel %vm1841, %v1817, -inf
        %v1892 = vmax.f32 %v1890, %v1891
        %v1893 = vrot.slane %v1892, 4
        %v1894 = vmax.f32 %v1892, %v1893
        %v1895 = vrot.slane %v1894, 2
        %v1896 = vmax.f32 %v1894, %v1895
        %v1897 = vrot.slane %v1896, 1
        %v1898 = vmax.f32 %v1896, %v1897
        %v1899 = vmax.f32 %v1818, %v1820
        %v1900 = vrot.slane %v1899, 4
        %v1901 = vmax.f32 %v1899, %v1900
        %v1902 = vrot.slane %v1901, 2
        %v1903 = vmax.f32 %v1901, %v1902
        %v1904 = vrot.slane %v1903, 1
        %v1905 = vmax.f32 %v1903, %v1904
        %v1906 = vsel %vm1841, %v1819, -inf
        %v1907 = vsel %vm1841, %v1821, -inf
        %v1908 = vmax.f32 %v1906, %v1907
        %v1909 = vrot.slane %v1908, 4
        %v1910 = vmax.f32 %v1908, %v1909
        %v1911 = vrot.slane %v1910, 2
        %v1912 = vmax.f32 %v1910, %v1911
        %v1913 = vrot.slane %v1912, 1
        %v1914 = vmax.f32 %v1912, %v1913
        %v1915 = vmax.f32 %v1822, %v1824
        %v1916 = vrot.slane %v1915, 4
        %v1917 = vmax.f32 %v1915, %v1916
        %v1918 = vrot.slane %v1917, 2
        %v1919 = vmax.f32 %v1917, %v1918
        %v1920 = vrot.slane %v1919, 1
        %v1921 = vmax.f32 %v1919, %v1920
        %v1922 = vsel %vm1841, %v1823, -inf
        %v1923 = vsel %vm1841, %v1825, -inf
        %v1924 = vmax.f32 %v1922, %v1923
        %v1925 = vrot.slane %v1924, 4
        %v1926 = vmax.f32 %v1924, %v1925
        %v1927 = vrot.slane %v1926, 2
        %v1928 = vmax.f32 %v1926, %v1927
        %v1929 = vrot.slane %v1928, 1
        %v1930 = vmax.f32 %v1928, %v1929
        %v1931 = vmax.f32 %v1826, %v1828
        %v1932 = vrot.slane %v1931, 4
        %v1933 = vmax.f32 %v1931, %v1932
        %v1934 = vrot.slane %v1933, 2
        %v1935 = vmax.f32 %v1933, %v1934
        %v1936 = vrot.slane %v1935, 1
        %v1937 = vmax.f32 %v1935, %v1936
        %v1938 = vsel %vm1841, %v1827, -inf
        %v1939 = vsel %vm1841, %v1829, -inf
        %v1940 = vmax.f32 %v1938, %v1939
        %v1941 = vrot.slane %v1940, 4
        %v1942 = vmax.f32 %v1940, %v1941
        %v1943 = vrot.slane %v1942, 2
        %v1944 = vmax.f32 %v1942, %v1943
        %v1945 = vrot.slane %v1944, 1
        %v1946 = vmax.f32 %v1944, %v1945
        %v1947 = vmax.f32 %v1830, %v1832
        %v1948 = vrot.slane %v1947, 4
        %v1949 = vmax.f32 %v1947, %v1948
        %v1950 = vrot.slane %v1949, 2
        %v1951 = vmax.f32 %v1949, %v1950
        %v1952 = vrot.slane %v1951, 1
        %v1953 = vmax.f32 %v1951, %v1952
        %v1954 = vsel %vm1841, %v1831, -inf
        %v1955 = vsel %vm1841, %v1833, -inf
        %v1956 = vmax.f32 %v1954, %v1955
        %v1957 = vrot.slane %v1956, 4
        %v1958 = vmax.f32 %v1956, %v1957
        %v1959 = vrot.slane %v1958, 2
        %v1960 = vmax.f32 %v1958, %v1959
        %v1961 = vrot.slane %v1960, 1
        %v1962 = vmax.f32 %v1960, %v1961
        %v1963 = vld [vmem:[%s2] sm:$0x3]
        %v1965 = vperm.slane %v1963, 0
        %v1966 = vperm.slane %v1963, 1
        %v1969 = vadd.f32 %v1840, %v1965
        %v1970 = vadd.f32 %v1850, %v1966
        %v1971 = vadd.f32 %v1857, %v1965
        %v1972 = vadd.f32 %v1866, %v1966
        %v1973 = vadd.f32 %v1873, %v1965
        %v1974 = vadd.f32 %v1882, %v1966
        %v1975 = vadd.f32 %v1889, %v1965
        %v1976 = vadd.f32 %v1898, %v1966
        %v1977 = vadd.f32 %v1905, %v1965
        %v1978 = vadd.f32 %v1914, %v1966
        %v1979 = vadd.f32 %v1921, %v1965
        %v1980 = vadd.f32 %v1930, %v1966
        %v1981 = vadd.f32 %v1937, %v1965
        %v1982 = vadd.f32 %v1946, %v1966
        %v1983 = vadd.f32 %v1953, %v1965
        %v1984 = vadd.f32 %v1962, %v1966
        %v1985 = vmax.f32 %v1969, 0.0
        %v1986 = vmax.f32 %v1970, 0.0
        %v1987 = vmax.f32 %v1971, 0.0
        %v1988 = vmax.f32 %v1972, 0.0
        %v1989 = vmax.f32 %v1973, 0.0
        %v1990 = vmax.f32 %v1974, 0.0
        %v1991 = vmax.f32 %v1975, 0.0
        %v1992 = vmax.f32 %v1976, 0.0
        %v1993 = vmax.f32 %v1977, 0.0
        %v1994 = vmax.f32 %v1978, 0.0
        %v1995 = vmax.f32 %v1979, 0.0
        %v1996 = vmax.f32 %v1980, 0.0
        %v1997 = vmax.f32 %v1981, 0.0
        %v1998 = vmax.f32 %v1982, 0.0
        %v1999 = vmax.f32 %v1983, 0.0
        %v2000 = vmax.f32 %v1984, 0.0
        %v2017 = vrot.slane %v1987, 7
        %vm2018 = vcmask 1041409
        %v2019 = vsel %vm2018, %v2017, %v1985
        %v2020 = vrot.slane %v1989, 6
        %vm2021 = vcmask 1042434
        %v2022 = vsel %vm2021, %v2020, %v2019
        %v2023 = vrot.slane %v1991, 5
        %vm2024 = vcmask 1043459
        %v2025 = vsel %vm2024, %v2023, %v2022
        %v2026 = vrot.slane %v1993, 4
        %vm2027 = vcmask 1044484
        %v2028 = vsel %vm2027, %v2026, %v2025
        %v2029 = vrot.slane %v1995, 3
        %vm2030 = vcmask 1045509
        %v2031 = vsel %vm2030, %v2029, %v2028
        %v2032 = vrot.slane %v1997, 2
        %vm2033 = vcmask 1046534
        %v2034 = vsel %vm2033, %v2032, %v2031
        %v2035 = vrot.slane %v1999, 1
        %vm2036 = vcmask 1047559
        %v2037 = vsel %vm2036, %v2035, %v2034
        %v2038 = vrot.slane %v1988, 7
        %v2039 = vsel %vm2018, %v2038, %v1986
        %v2040 = vrot.slane %v1990, 6
        %v2041 = vsel %vm2021, %v2040, %v2039
        %v2042 = vrot.slane %v1992, 5
        %v2043 = vsel %vm2024, %v2042, %v2041
        %v2044 = vrot.slane %v1994, 4
        %v2045 = vsel %vm2027, %v2044, %v2043
        %v2046 = vrot.slane %v1996, 3
        %v2047 = vsel %vm2030, %v2046, %v2045
        %v2048 = vrot.slane %v1998, 2
        %v2049 = vsel %vm2033, %v2048, %v2047
        %v2050 = vrot.slane %v2000, 1
        %v2051 = vsel %vm2036, %v2050, %v2049
        %2054 = vst [vmem:[%s258] sm:$0xff] %v2037
        %2055 = vst.msk [vmem:[%s258 + $0x8] sm:$0xff] %vm1841, %v2051
        %v2056 = vpack.c.bf16 %v1985, %v1985
        %v2057 = vpack.c.bf16 %v1986, %v1986
        %v2058 = vpack.c.bf16 %v1987, %v1987
        %v2059 = vpack.c.bf16 %v1988, %v1988
        %v2060 = vpack.c.bf16 %v1989, %v1989
        %v2061 = vpack.c.bf16 %v1990, %v1990
        %v2062 = vpack.c.bf16 %v1991, %v1991
        %v2063 = vpack.c.bf16 %v1992, %v1992
        %v2064 = vpack.c.bf16 %v1993, %v1993
        %v2065 = vpack.c.bf16 %v1994, %v1994
        %v2066 = vpack.c.bf16 %v1995, %v1995
        %v2067 = vpack.c.bf16 %v1996, %v1996
        %v2068 = vpack.c.bf16 %v1997, %v1997
        %v2069 = vpack.c.bf16 %v1998, %v1998
        %v2070 = vpack.c.bf16 %v1999, %v1999
        %v2071 = vpack.c.bf16 %v2000, %v2000
        %v2072 = vld [vmem:[%s4] sm:$0xf]
        %v2073 = vld [vmem:[%s4 + $0x4] sm:$0xf]
        %v2074 = vld [vmem:[%s4 + $0x8] sm:$0xf]
        %v2075 = vld [vmem:[%s4 + $0xc] sm:$0xf]
        %v2076 = vld [vmem:[%s4 + $0x10] sm:$0xf]
        %v2077 = vld [vmem:[%s4 + $0x14] sm:$0xf]
        %v2078 = vld [vmem:[%s4 + $0x18] sm:$0xf]
        %v2079 = vld [vmem:[%s4 + $0x1c] sm:$0xf]
        %v2080 = vld [vmem:[%s4 + $0x20] sm:$0xf]
        %v2081 = vld [vmem:[%s4 + $0x24] sm:$0xf]
        %v2082 = vld [vmem:[%s4 + $0x28] sm:$0xf]
        %v2083 = vld [vmem:[%s4 + $0x2c] sm:$0xf]
        %v2084 = vld [vmem:[%s4 + $0x30] sm:$0xf]
        %v2085 = vld [vmem:[%s4 + $0x34] sm:$0xf]
        %v2086 = vld [vmem:[%s4 + $0x38] sm:$0xf]
        %v2087 = vld [vmem:[%s4 + $0x3c] sm:$0xf]
        %v2088 = vld [vmem:[%s4 + $0x40] sm:$0xf]
        %v2089 = vld [vmem:[%s4 + $0x44] sm:$0xf]
        %v2090 = vld [vmem:[%s4 + $0x48] sm:$0x7]
        %v2107 = vunpack.c.l.b16 %v2056
        %v2108 = vunpack.c.l.b16 %v2057
        %v2109 = vunpack.c.l.b16 %v2058
        %v2110 = vunpack.c.l.b16 %v2059
        %v2111 = vunpack.c.l.b16 %v2060
        %v2112 = vunpack.c.l.b16 %v2061
        %v2113 = vunpack.c.l.b16 %v2062
        %v2114 = vunpack.c.l.b16 %v2063
        %v2115 = vunpack.c.l.b16 %v2064
        %v2116 = vunpack.c.l.b16 %v2065
        %v2117 = vunpack.c.l.b16 %v2066
        %v2118 = vunpack.c.l.b16 %v2067
        %v2119 = vunpack.c.l.b16 %v2068
        %v2120 = vunpack.c.l.b16 %v2069
        %v2121 = vunpack.c.l.b16 %v2070
        %v2122 = vunpack.c.l.b16 %v2071
        %v2123 = vrot.slane %v2109, 7
        %v2124 = vsel %vm2018, %v2123, %v2107
        %v2125 = vrot.slane %v2111, 6
        %v2126 = vsel %vm2021, %v2125, %v2124
        %v2127 = vrot.slane %v2113, 5
        %v2128 = vsel %vm2024, %v2127, %v2126
        %v2129 = vrot.slane %v2115, 4
        %v2130 = vsel %vm2027, %v2129, %v2128
        %v2131 = vrot.slane %v2117, 3
        %v2132 = vsel %vm2030, %v2131, %v2130
        %v2133 = vrot.slane %v2119, 2
        %v2134 = vsel %vm2033, %v2133, %v2132
        %v2135 = vrot.slane %v2121, 1
        %v2136 = vsel %vm2036, %v2135, %v2134
        %v2137 = vrot.slane %v2110, 7
        %v2138 = vsel %vm2018, %v2137, %v2108
        %v2139 = vrot.slane %v2112, 6
        %v2140 = vsel %vm2021, %v2139, %v2138
        %v2141 = vrot.slane %v2114, 5
        %v2142 = vsel %vm2024, %v2141, %v2140
        %v2143 = vrot.slane %v2116, 4
        %v2144 = vsel %vm2027, %v2143, %v2142
        %v2145 = vrot.slane %v2118, 3
        %v2146 = vsel %vm2030, %v2145, %v2144
        %v2147 = vrot.slane %v2120, 2
        %v2148 = vsel %vm2033, %v2147, %v2146
        %v2149 = vrot.slane %v2122, 1
        %v2150 = vsel %vm2036, %v2149, %v2148
        %v2151 = vpack.c.b16 %v2136, %v2136
        %v2152 = vpack.c.b16 %v2150, %v2150
        %v2173 = vunpack.c.l.b16 %v2072
        %v2174 = vunpack.c.l.b16 %v2073
        %v2175 = vunpack.c.l.b16 %v2074
        %v2176 = vunpack.c.l.b16 %v2075
        %v2177 = vunpack.c.l.b16 %v2076
        %v2178 = vunpack.c.l.b16 %v2077
        %v2179 = vunpack.c.l.b16 %v2078
        %v2180 = vunpack.c.l.b16 %v2079
        %v2181 = vunpack.c.l.b16 %v2080
        %v2182 = vunpack.c.l.b16 %v2081
        %v2183 = vunpack.c.l.b16 %v2082
        %v2184 = vunpack.c.l.b16 %v2083
        %v2185 = vunpack.c.l.b16 %v2084
        %v2186 = vunpack.c.l.b16 %v2085
        %v2187 = vunpack.c.l.b16 %v2086
        %v2188 = vunpack.c.l.b16 %v2087
        %v2189 = vunpack.c.l.b16 %v2088
        %v2190 = vunpack.c.l.b16 %v2089
        %v2191 = vunpack.c.l.b16 %v2090
        %v2192 = vpack.c.b16 %v2174, %v2173
        %v2193 = vpack.c.b16 %v2176, %v2175
        %v2194 = vpack.c.b16 %v2178, %v2177
        %v2195 = vpack.c.b16 %v2180, %v2179
        %v2196 = vpack.c.b16 %v2182, %v2181
        %v2197 = vpack.c.b16 %v2184, %v2183
        %v2198 = vpack.c.b16 %v2186, %v2185
        %v2199 = vpack.c.b16 %v2188, %v2187
        %v2200 = vpack.c.b16 %v2190, %v2189
        %v2201 = vpack.c.b16 %v2191, %v2191
        %v2212 = vsel %vm1841, %v2152, 0
        %vm2214 = vcmask 1042432
        %v2216 = vsel %vm2214, %v2201, 0
        %2218 = vmatpush.bf16.msra.mxu0 %v2199
        %2219 = vmatpush.bf16.msra.mxu0 %v2198
        %2220 = vmatpush.bf16.msra.mxu0 %v2197
        %2221 = vmatpush.bf16.msra.mxu0 %v2196
        %2222 = vmatpush.bf16.msra.mxu0 %v2195
        %2223 = vmatpush.bf16.msra.mxu0 %v2194
        %2224 = vmatpush.bf16.msra.mxu0 %v2193
        %2225 = vmatpush.bf16.msra.mxu0 %v2192
        %2226 = vmatmul.bf16.gmra.mxu0 %v2151
        %v2227 = vpop.f32.mrf.mxu0
        %v2228 = vadd.f32 0.0, %v2227
        %v2229 = vpop.f32.mrf.mxu0
        %2230 = vdwg.mxu0
        %2231 = vmatpush.bf16.msra.mxu0 0
        %2232 = vmatpush.bf16.msra.mxu0 0
        %2233 = vmatpush.bf16.msra.mxu0 0
        %2234 = vmatpush.bf16.msra.mxu0 0
        %2235 = vmatpush.bf16.msra.mxu0 0
        %2236 = vmatpush.bf16.msra.mxu0 0
        %2237 = vmatpush.bf16.msra.mxu0 %v2216
        %2238 = vmatpush.bf16.msra.mxu0 %v2200
        %2239 = vmatmul.bf16.gmra.mxu0 %v2212
        %v2240 = vpop.f32.mrf.mxu0
        %v2241 = vadd.f32 %v2228, %v2240
        %v2242 = vpop.f32.mrf.mxu0
        %2243 = vdwg.mxu0
        %2244 = vst [vmem:[%s251] sm:$0xff] %v2241
        %s2245 = sand.u32 %s142, 1
        %s2246 = scalar_lea.sflag [#allocation3], %s2245
        %s2247 = sand.u32 %s142, 1
        %s2248 = smul.addr %s2247, 8
        %s2249 = scalar_lea.vmem [#allocation2], %s2248
        %s2250 = sand.u32 %s168, 1
        %s2251 = scalar_lea.sflag [#allocation5], %s2250
        %s2252 = sand.u32 %s168, 1
        %s2253 = smul.addr %s2252, 16
        %s2254 = scalar_lea.vmem [#allocation4], %s2253
        // Predicated region
        $region41: #{tpu_custom_call.1} parent=39 // pred_check
          %p2255 = pneg %p152
        $region42: #{tpu_custom_call.1} parent=39 // pred_check_branch
          %2257 = sbr.rel (%p2255) target = $region44
        $region43: #{tpu_custom_call.1} parent=39 // pred_region
          %2259 = vsyncadd %s2246, 0
          %s2260 = smul.addr %s24, 8
          %s2261 = scalar_lea.hbm %s5, %s2260
          %s2263 = sshll.u32 %s2249, 4
          %s2264 = int_to_ptr.vmem [resolvable:$true] %s2263
          %s2265 = sshll.u32 %s2261, 4
          %s2266 = int_to_ptr.hbm [resolvable:$true] %s2265
          %2268 = dma.vmem_to_hbm [thread:$0]  %s2264, 128, %s2266, %s2246
        $region44: #{tpu_custom_call.1} parent=39 // pred_fallthru
          _
        // Predicated region
        $region45: #{tpu_custom_call.1} parent=39 // pred_check
          %p2269 = pneg %p178
        $region46: #{tpu_custom_call.1} parent=39 // pred_check_branch
          %2271 = sbr.rel (%p2269) target = $region48
        $region47: #{tpu_custom_call.1} parent=39 // pred_region
          %2273 = vsyncadd %s2251, 0
          %s2274 = smul.addr %s24, 2
          %s2275 = smul.addr %s2274, 8
          %s2276 = scalar_lea.hbm %s6, %s2275
          %s2278 = sshll.u32 %s2254, 4
          %s2279 = int_to_ptr.vmem [resolvable:$true] %s2278
          %s2280 = sshll.u32 %s2276, 4
          %s2281 = int_to_ptr.hbm [resolvable:$true] %s2280
          %2283 = dma.vmem_to_hbm [thread:$0]  %s2279, 256, %s2281, %s2251
        $region48: #{tpu_custom_call.1} parent=39 // pred_fallthru
          _
      $region40: #{tpu_custom_call.1} parent=5 // pred_fallthru
        _
      %p2284 = scmp.le.s32.totalorder 2, %s19
      // Predicated region
      $region49: #{tpu_custom_call.1} parent=5 // pred_check
        %p2285 = pneg %p2284
      $region50: #{tpu_custom_call.1} parent=5 // pred_check_branch
        %2287 = sbr.rel (%p2285) target = $region52
      $region51: #{tpu_custom_call.1} parent=5 // pred_region
        %s2288 = ssub.s32 %s19, 2
        // Predicated region
        $region53: #{tpu_custom_call.1} parent=51 // pred_check
          %p2289 = pneg %p158
        $region54: #{tpu_custom_call.1} parent=51 // pred_check_branch
          %2291 = sbr.rel (%p2289) target = $region56
        $region55: #{tpu_custom_call.1} parent=51 // pred_region
          %s2292 = sand.u32 %s143, 1
          %s2293 = scalar_lea.sflag [#allocation3], %s2292
          %s2294 = sand.u32 %s143, 1
          %s2295 = smul.addr %s2294, 8
          %s2296 = scalar_lea.vmem [#allocation2], %s2295
          %2298 = dma.done %s2293, 128
        $region56: #{tpu_custom_call.1} parent=51 // pred_fallthru
          _
        // Predicated region
        $region57: #{tpu_custom_call.1} parent=51 // pred_check
          %p2299 = pneg %p184
        $region58: #{tpu_custom_call.1} parent=51 // pred_check_branch
          %2301 = sbr.rel (%p2299) target = $region60
        $region59: #{tpu_custom_call.1} parent=51 // pred_region
          %s2302 = sand.u32 %s169, 1
          %s2303 = scalar_lea.sflag [#allocation5], %s2302
          %s2304 = sand.u32 %s169, 1
          %s2305 = smul.addr %s2304, 16
          %s2306 = scalar_lea.vmem [#allocation4], %s2305
          %2308 = dma.done %s2303, 256
        $region60: #{tpu_custom_call.1} parent=51 // pred_fallthru
          _
      $region52: #{tpu_custom_call.1} parent=5 // pred_fallthru
        _
    $region6: #{tpu_custom_call.1} parent=1 // loop_footer
      %s23 = sadd.s32 1, %s19
    $region7: #{tpu_custom_call.1} parent=1 // loop_footer_branch
      %18 = sbr.rel target = $region3
    $region8: #{tpu_custom_call.1} parent=1 // loop_exit
      _
    %2309 = vsyncpa [#allocation3], 1
    %s2310 = scalar_lea.sflag [#allocation3], 1
    %2311 = vsyncpa %s2310, 1
    %2312 = vsyncpa [#allocation5], 1
    %s2313 = scalar_lea.sflag [#allocation5], 1
    %2314 = vsyncpa %s2313, 1

</llo_original>
